<compile_context>
chip_gen: v5e
topology: v5e:2x2
jax: 0.10.0
libtpu: 0.0.40
codegen_flags: <defaults>
</compile_context>

<pallas_src>
import math

import jax
import jax.numpy as jnp
from jax.experimental import pallas as pl
from jax.experimental.pallas import tpu as pltpu


def _round_up(v: int, m: int) -> int:
    return ((v + m - 1) // m) * m


# --------------------------------------------------------------------------- #
# Kernel
# --------------------------------------------------------------------------- #
def make_alstm_kernel(num_layers: int, T: int, H: int, output_dim: int):
    """Kernel closed over static num_layers / seq len / hidden dim / output dim."""

    def kernel(p0_ref, *refs):
        # refs layout (after p0):
        #   w_hh_T[0..L-1]   : (H, 4H)          fused recurrent weights (i,f,g,o)
        #   w_ihn_T[1..L-1]  : (H, 4H)          next-layer input projections
        #   b_n[1..L-1]      : (1, 4H)          next-layer fused biases
        #   head_w           : (H, 1+out)       [attn_w | fc_w]
        #   fc_b             : (1, out)
        #   out_ref          : (bn, out)
        #   proj_scratch[*]  : (T, bn, 4H)      VMEM ping-pong activation slabs
        refs = list(refs)
        idx = 0
        w_hh_refs = refs[idx:idx + num_layers]; idx += num_layers
        w_ihn_refs = refs[idx:idx + num_layers - 1]; idx += num_layers - 1
        b_n_refs = refs[idx:idx + num_layers - 1]; idx += num_layers - 1
        head_w_ref = refs[idx]
        fc_b_ref = refs[idx + 1]
        out_ref = refs[idx + 2]
        proj_scratch = refs[idx + 3:]

        bn = out_ref.shape[0]                 # rows in this grid block (mult. of 8)
        head_ts = []                          # per-step (bn, 1+out) of the LAST layer

        # ---- stacked LSTM (PyTorch gate order: i, f, g, o) ----
        for l in range(num_layers):
            is_last = (l == num_layers - 1)
            whh = w_hh_refs[l][...]                           # (H, 4H), resident
            if is_last:
                w_out = head_w_ref[...]                       # (H, 1+out)
                b_out = None
            else:
                w_out = w_ihn_refs[l][...]                    # (H, 4H)
                b_out = b_n_refs[l][...]                      # (1, 4H) f32
                dst = proj_scratch[l % 2]                     # (T, bn, 4H) f32

            # Source of the (already bias-folded) input projections for this layer.
            proj_src = p0_ref if l == 0 else proj_scratch[(l - 1) % 2]

            h = jnp.zeros((bn, H), jnp.float32)
            c = jnp.zeros((bn, H), jnp.float32)

            # T is small; static unroll keeps the whole chain visible to the
            # scheduler.  TODO(synk): switch to lax.fori_loop(unroll=True) with
            # dynamic scratch indexing for long sequence_length.
            for t in range(T):
                # One lane-dense recurrent matmul per step (bf16 in, f32 acc).
                z = proj_src[t] + jnp.dot(h.astype(whh.dtype), whh,
                                          preferred_element_type=jnp.float32)  # (bn, 4H)
                s = jax.nn.sigmoid(z)                 # one full-vreg pass: i, f, o
                g = jnp.tanh(z[:, 2 * H:3 * H])
                c = s[:, H:2 * H] * c + s[:, 0:H] * g
                h = s[:, 3 * H:4 * H] * jnp.tanh(c)

                # Off-the-critical-path projection of h_t: the next layer's input
                # projection, or the fused [attn | fc] head for the last layer.
                hp = jnp.dot(h.astype(w_out.dtype), w_out,
                             preferred_element_type=jnp.float32)
                if is_last:
                    head_ts.append(hp)                # (bn, 1+out)
                else:
                    dst[t] = hp + b_out               # (bn, 4H)
            # NOTE: inference semantics -> inter-layer LSTM dropout is identity.

        # ---- fused attention + fc head ----
        # s_t = h_t @ attn_w ; p_t = h_t @ fc_w.  The attention bias is constant
        # over T, so it cancels in the softmax and is dropped.
        s_list = [hp[:, 0:1] for hp in head_ts]
        p_list = [hp[:, 1:1 + output_dim] for hp in head_ts]

        m = s_list[0]
        for t in range(1, T):
            m = jnp.maximum(m, s_list[t])
        denom = jnp.zeros_like(m)
        acc = jnp.zeros((bn, output_dim), jnp.float32)
        for t in range(T):
            e = jnp.exp(s_list[t] - m)
            denom = denom + e
            acc = acc + e * p_list[t]

        # out = sum_t softmax_t * (h_t @ fc_w) + fc_b == fc(context_vector)
        out_ref[...] = acc * pl.reciprocal(denom, approx=True) + fc_b_ref[...]

    return kernel


# --------------------------------------------------------------------------- #
# Parameters
# --------------------------------------------------------------------------- #
def init_alstm_params(key, input_dim, hidden_dim, num_layers, output_dim=1):
    """PyTorch-layout parameters (uniform(-1/sqrt(H), 1/sqrt(H)))."""
    H = hidden_dim
    k = 1.0 / math.sqrt(H)
    params = {"lstm": []}
    for l in range(num_layers):
        d_in = input_dim if l == 0 else H
        key, k1, k2, k3, k4 = jax.random.split(key, 5)
        params["lstm"].append({
            "weight_ih": jax.random.uniform(k1, (4 * H, d_in), jnp.float32, -k, k),
            "weight_hh": jax.random.uniform(k2, (4 * H, H), jnp.float32, -k, k),
            "bias_ih": jax.random.uniform(k3, (4 * H,), jnp.float32, -k, k),
            "bias_hh": jax.random.uniform(k4, (4 * H,), jnp.float32, -k, k),
        })
    key, k1, k2, k3, k4 = jax.random.split(key, 5)
    params["attn_weight"] = jax.random.uniform(k1, (1, H), jnp.float32, -k, k)
    params["attn_bias"] = jax.random.uniform(k2, (1,), jnp.float32, -k, k)
    params["fc_weight"] = jax.random.uniform(k3, (output_dim, H), jnp.float32, -k, k)
    params["fc_bias"] = jax.random.uniform(k4, (output_dim,), jnp.float32, -k, k)
    return params


def pack_params(params, hidden_dim, num_layers, matmul_dtype=jnp.bfloat16):
    """Convert PyTorch-layout params into the kernel's pre-transposed layout."""
    H = hidden_dim
    lstm = params["lstm"]
    packed = {}
    # Layer-0 input projection runs in the wrapper (f32); K = input_dim is tiny.
    packed["w_ih0_T"] = lstm[0]["weight_ih"].T                                   # (D, 4H)
    packed["b0"] = (lstm[0]["bias_ih"] + lstm[0]["bias_hh"]).reshape(1, 4 * H)
    # One fused lane-dense (H, 4H) recurrent weight per layer (gate order i,f,g,o).
    packed["w_hh_T"] = [lp["weight_hh"].T.astype(matmul_dtype) for lp in lstm]
    # Next-layer input projections (layers 1..L-1), consumed inside the t-loop.
    packed["w_ihn_T"] = [lstm[l]["weight_ih"].T.astype(matmul_dtype)
                         for l in range(1, num_layers)]
    packed["b_n"] = [(lstm[l]["bias_ih"] + lstm[l]["bias_hh"]).reshape(1, 4 * H)
                     for l in range(1, num_layers)]
    # Fused [attn_w | fc_w] head; attn bias cancels in the softmax over T.
    packed["head_w"] = jnp.concatenate(
        [params["attn_weight"].T, params["fc_weight"].T], axis=1).astype(matmul_dtype)
    packed["fc_b"] = params["fc_bias"].reshape(1, -1).astype(jnp.float32)
    return packed


# --------------------------------------------------------------------------- #
# Wrapper
# --------------------------------------------------------------------------- #
def _pick_block_n(N, max_block_n):
    # >= 2 row blocks whenever N allows it (v7x: 2 TensorCores share the grid),
    # rows per block a multiple of 8 (sublane alignment).
    bn = _round_up(max(8, -(-N // 2)), 8)
    bn = min(bn, max_block_n, _round_up(N, 8))
    n_pad = _round_up(N, bn)
    return bn, n_pad


def alstm_forward(x, params, *, input_dim, hidden_dim, num_layers,
                  sequence_length, output_dim=1, max_block_n=512,
                  matmul_dtype=jnp.bfloat16):
    """Mirrors ALSTM.forward (inference): x is (batch, num_stocks, seq_len, feat)."""
    batch, num_stocks, seq_len, feat = x.shape
    # Literal guard from the reference forward(): it checks x.size(1).
    if num_stocks < sequence_length:
        raise ValueError("out of sequence length")

    T, D, H = sequence_length, input_dim, hidden_dim
    xs = x[:, :, -T:, :].reshape(-1, T, D).astype(jnp.float32)
    N = xs.shape[0]

    packed = pack_params(params, H, num_layers, matmul_dtype)

    # Layer-0 input projection hoisted out of the kernel (K = D uses <4% of the
    # MXU contraction depth; plain XLA handles it fine), bias folded in.
    p0 = jnp.einsum("ntd,dk->ntk", xs, packed["w_ih0_T"]) + packed["b0"]   # (N, T, 4H)
    p0 = jnp.transpose(p0, (1, 0, 2))                                      # (T, N, 4H)

    bn, n_pad = _pick_block_n(N, max_block_n)
    if n_pad != N:
        p0 = jnp.pad(p0, ((0, 0), (0, n_pad - N), (0, 0)))
    grid = (n_pad // bn,)

    n_proj_scratch = min(2, max(0, num_layers - 1))

    flat = [p0]
    in_specs = [pl.BlockSpec((T, bn, 4 * H), lambda i: (0, i, 0))]
    for w in packed["w_hh_T"]:
        flat.append(w)
        in_specs.append(pl.BlockSpec((H, 4 * H), lambda i: (0, 0)))
    for w in packed["w_ihn_T"]:
        flat.append(w)
        in_specs.append(pl.BlockSpec((H, 4 * H), lambda i: (0, 0)))
    for b in packed["b_n"]:
        flat.append(b)
        in_specs.append(pl.BlockSpec((1, 4 * H), lambda i: (0, 0)))
    flat += [packed["head_w"], packed["fc_b"]]
    in_specs += [
        pl.BlockSpec((H, 1 + output_dim), lambda i: (0, 0)),
        pl.BlockSpec((1, output_dim), lambda i: (0, 0)),
    ]

    # Explicit VMEM budget: double-buffered input slab + scratch slabs + resident
    # weights + temporaries, with headroom.  Clamped to 64 MiB so a block size
    # tuned on v6e (128 MiB VMEM) cannot silently blow v7x (64 MiB); floor of
    # 32 MiB raises v5e's 16 MiB default scoped limit.
    f32b = 4
    wb = jnp.dtype(matmul_dtype).itemsize
    blk_proj = T * bn * 4 * H * f32b
    weight_bytes = (num_layers * H * 4 * H * wb
                    + (num_layers - 1) * (H * 4 * H * wb + 4 * H * f32b)
                    + H * (1 + output_dim) * wb + output_dim * f32b)
    est = (2 * blk_proj                      # pipelined p0 block (double-buffered)
           + n_proj_scratch * blk_proj       # ping-pong activation slabs
           + 2 * weight_bytes                # resident weights (conservatively x2)
           + 8 * bn * 4 * H * f32b           # per-step temporaries / head values
           + 2 * bn * output_dim * f32b)
    vmem_limit = int(min(64 * 2 ** 20, max(32 * 2 ** 20, 2 * est)))

    kernel = make_alstm_kernel(num_layers, T, H, output_dim)

    out = pl.pallas_call(
        kernel,
        grid=grid,
        out_shape=jax.ShapeDtypeStruct((n_pad, output_dim), jnp.float32),
        in_specs=in_specs,
        out_specs=pl.BlockSpec((bn, output_dim), lambda i: (i, 0)),
        scratch_shapes=[pltpu.VMEM((T, bn, 4 * H), jnp.float32)] * n_proj_scratch,
        compiler_params=pltpu.CompilerParams(
            dimension_semantics=("parallel",),
            vmem_limit_bytes=vmem_limit),
    )(*flat)

    out = out[:N]
    if output_dim == 1:
        # Matches the reference `out.view(batch_size, num_stocks)`.
        return out.reshape(batch, num_stocks)
    return out.reshape(batch, num_stocks, output_dim)


# --------------------------------------------------------------------------- #
# Pure-JAX f32 reference (eval mode) for validation
# --------------------------------------------------------------------------- #
def alstm_reference(x, params, *, input_dim, hidden_dim, num_layers,
                    sequence_length):
    batch, num_stocks, _, _ = x.shape
    T, H = sequence_length, hidden_dim
    xs = x[:, :, -T:, :].reshape(-1, T, input_dim).astype(jnp.float32)
    N = xs.shape[0]
    inp = xs
    for l in range(num_layers):
        lp = params["lstm"][l]
        b = lp["bias_ih"] + lp["bias_hh"]
        h = jnp.zeros((N, H), jnp.float32)
        c = jnp.zeros((N, H), jnp.float32)
        outs = []
        for t in range(T):
            z = inp[:, t, :] @ lp["weight_ih"].T + h @ lp["weight_hh"].T + b
            i = jax.nn.sigmoid(z[:, 0:H])
            f = jax.nn.sigmoid(z[:, H:2 * H])
            g = jnp.tanh(z[:, 2 * H:3 * H])
            o = jax.nn.sigmoid(z[:, 3 * H:4 * H])
            c = f * c + i * g
            h = o * jnp.tanh(c)
            outs.append(h)
        inp = jnp.stack(outs, axis=1)
    scores = inp @ params["attn_weight"].T + params["attn_bias"]
    w = jax.nn.softmax(scores, axis=1)
    ctx = jnp.sum(w * inp, axis=1)
    out = ctx @ params["fc_weight"].T + params["fc_bias"]
    return out.reshape(batch, num_stocks)


if __name__ == "__main__":
    # Shapes consistent with the module's forward():
    #   x: (batch=2, num_stocks=6, seq_len=8, feature_dim=4)
    #   model: input_dim=4, hidden_dim=32, num_layers=2, output_dim=1, seq_length=5
    input_dim = 4
    hidden_dim = 32
    num_layers = 2
    sequence_length = 5

    key = jax.random.PRNGKey(0)
    key, xk, pk = jax.random.split(key, 3)
    x = jax.random.normal(xk, (2, 6, 8, input_dim), dtype=jnp.float32)
    params = init_alstm_params(pk, input_dim, hidden_dim, num_layers, output_dim=1)

    out = alstm_forward(x, params, input_dim=input_dim, hidden_dim=hidden_dim,
                        num_layers=num_layers, sequence_length=sequence_length)
    out = jax.block_until_ready(out)
    assert out.shape == (2, 6), out.shape
    assert bool(jnp.all(jnp.isfinite(out)))

    ref = alstm_reference(x, params, input_dim=input_dim, hidden_dim=hidden_dim,
                          num_layers=num_layers, sequence_length=sequence_length)
    err = float(jnp.max(jnp.abs(out - ref)))
    # bf16 matmul weights (f32 accumulate, f32 c/h state) -> loose tolerance.
    assert err < 5e-2, f"kernel vs f32 reference max |diff| = {err}"
    print("KERNEL_OK")
</pallas_src>

<mosaic_0001>
module attributes {stable_mosaic.version = 11 : i64} {
  func.func @kernel(%arg0: i32, %arg1: memref<5x8x128xf32, #tpu.memory_space<vmem>>, %arg2: memref<32x128xbf16, #tpu.memory_space<vmem>>, %arg3: memref<32x128xbf16, #tpu.memory_space<vmem>>, %arg4: memref<32x128xbf16, #tpu.memory_space<vmem>>, %arg5: memref<1x128xf32, #tpu.memory_space<vmem>>, %arg6: memref<32x2xbf16, #tpu.memory_space<vmem>>, %arg7: memref<1x1xf32, #tpu.memory_space<vmem>>, %arg8: memref<8x1xf32, #tpu.memory_space<vmem>>, %arg9: memref<5x8x128xf32, #tpu.memory_space<vmem>>) attributes {dimension_semantics = [#tpu.dimension_semantics<parallel>], iteration_bounds = array<i64: 2>, scalar_prefetch = 0 : i64, scratch_operands = 1 : i64, tpu.core_type = #tpu.core_type<tc>, window_params = [{transform_indices = @transform_0, window_bounds = array<i64: 5, 8, 128>}, {pipeline_mode = #tpu.pipeline_mode<synchronous>, transform_indices = @transform_1, window_bounds = array<i64: 32, 128>}, {pipeline_mode = #tpu.pipeline_mode<synchronous>, transform_indices = @transform_2, window_bounds = array<i64: 32, 128>}, {pipeline_mode = #tpu.pipeline_mode<synchronous>, transform_indices = @transform_3, window_bounds = array<i64: 32, 128>}, {pipeline_mode = #tpu.pipeline_mode<synchronous>, transform_indices = @transform_4, window_bounds = array<i64: 1, 128>}, {pipeline_mode = #tpu.pipeline_mode<synchronous>, transform_indices = @transform_5, window_bounds = array<i64: 32, 2>}, {pipeline_mode = #tpu.pipeline_mode<synchronous>, transform_indices = @transform_6, window_bounds = array<i64: 1, 1>}, {transform_indices = @transform_7, window_bounds = array<i64: 8, 1>}]} {
    %c0 = arith.constant 0 : index
    %c0_0 = arith.constant 0 : index
    %0 = vector.load %arg2[%c0, %c0_0] : memref<32x128xbf16, #tpu.memory_space<vmem>>, vector<32x128xbf16>
    %c0_1 = arith.constant 0 : index
    %c0_2 = arith.constant 0 : index
    %1 = vector.load %arg4[%c0_1, %c0_2] : memref<32x128xbf16, #tpu.memory_space<vmem>>, vector<32x128xbf16>
    %c0_3 = arith.constant 0 : index
    %c0_4 = arith.constant 0 : index
    %2 = vector.load %arg5[%c0_3, %c0_4] : memref<1x128xf32, #tpu.memory_space<vmem>>, vector<1x128xf32>
    %cst = arith.constant 0.000000e+00 : f32
    %3 = vector.broadcast %cst : f32 to vector<8x32xf32>
    %cst_5 = arith.constant 0.000000e+00 : f32
    %4 = vector.broadcast %cst_5 : f32 to vector<8x32xf32>
    %c0_6 = arith.constant 0 : index
    %c0_7 = arith.constant 0 : index
    %c0_8 = arith.constant 0 : index
    %5 = vector.load %arg1[%c0_6, %c0_7, %c0_8] : memref<5x8x128xf32, #tpu.memory_space<vmem>>, vector<1x8x128xf32>
    %6 = vector.shape_cast %5 : vector<1x8x128xf32> to vector<8x128xf32>
    %7 = arith.truncf %3 : vector<8x32xf32> to vector<8x32xbf16>
    %cst_9 = arith.constant dense<0.000000e+00> : vector<8x128xf32>
    %8 = tpu.matmul %7, %0, %cst_9 {dimension_numbers = #tpu.dot_dimension_numbers<[1], [0], [0], [1], [0, 0, 1, 1], [], []>} : vector<8x32xbf16>, vector<32x128xbf16>, vector<8x128xf32> -> vector<8x128xf32>
    %9 = arith.addf %6, %8 : vector<8x128xf32>
    %10 = arith.negf %9 : vector<8x128xf32>
    %11 = math.exp %10 : vector<8x128xf32>
    %cst_10 = arith.constant 1.000000e+00 : f32
    %12 = vector.broadcast %cst_10 : f32 to vector<8x128xf32>
    %13 = arith.addf %12, %11 : vector<8x128xf32>
    %14 = arith.divf %12, %13 : vector<8x128xf32>
    %15 = vector.extract_strided_slice %9 {offsets = [0, 64], sizes = [8, 32], strides = [1, 1]} : vector<8x128xf32> to vector<8x32xf32>
    %16 = math.tanh %15 : vector<8x32xf32>
    %17 = vector.extract_strided_slice %14 {offsets = [0, 32], sizes = [8, 32], strides = [1, 1]} : vector<8x128xf32> to vector<8x32xf32>
    %18 = arith.mulf %17, %4 : vector<8x32xf32>
    %19 = vector.extract_strided_slice %14 {offsets = [0, 0], sizes = [8, 32], strides = [1, 1]} : vector<8x128xf32> to vector<8x32xf32>
    %20 = arith.mulf %19, %16 : vector<8x32xf32>
    %21 = arith.addf %18, %20 : vector<8x32xf32>
    %22 = vector.extract_strided_slice %14 {offsets = [0, 96], sizes = [8, 32], strides = [1, 1]} : vector<8x128xf32> to vector<8x32xf32>
    %23 = math.tanh %21 : vector<8x32xf32>
    %24 = arith.mulf %22, %23 : vector<8x32xf32>
    %25 = arith.truncf %24 : vector<8x32xf32> to vector<8x32xbf16>
    %cst_11 = arith.constant dense<0.000000e+00> : vector<8x128xf32>
    %26 = tpu.matmul %25, %1, %cst_11 {dimension_numbers = #tpu.dot_dimension_numbers<[1], [0], [0], [1], [0, 0, 1, 1], [], []>} : vector<8x32xbf16>, vector<32x128xbf16>, vector<8x128xf32> -> vector<8x128xf32>
    %27 = vector.broadcast %2 : vector<1x128xf32> to vector<8x128xf32>
    %28 = arith.addf %26, %27 : vector<8x128xf32>
    %c0_12 = arith.constant 0 : index
    %c0_13 = arith.constant 0 : index
    %c0_14 = arith.constant 0 : index
    %29 = vector.load %arg9[%c0_12, %c0_13, %c0_14] : memref<5x8x128xf32, #tpu.memory_space<vmem>>, vector<1x8x128xf32>
    %30 = vector.shape_cast %29 : vector<1x8x128xf32> to vector<8x128xf32>
    %31 = vector.shape_cast %28 : vector<8x128xf32> to vector<1x8x128xf32>
    tpu.vector_store %arg9[%c0_12, %c0_13, %c0_14], %31 {strides = array<i32>} : memref<5x8x128xf32, #tpu.memory_space<vmem>>, vector<1x8x128xf32>,
    %c1 = arith.constant 1 : index
    %c0_15 = arith.constant 0 : index
    %c0_16 = arith.constant 0 : index
    %32 = vector.load %arg1[%c1, %c0_15, %c0_16] : memref<5x8x128xf32, #tpu.memory_space<vmem>>, vector<1x8x128xf32>
    %33 = vector.shape_cast %32 : vector<1x8x128xf32> to vector<8x128xf32>
    %34 = arith.truncf %24 : vector<8x32xf32> to vector<8x32xbf16>
    %cst_17 = arith.constant dense<0.000000e+00> : vector<8x128xf32>
    %35 = tpu.matmul %34, %0, %cst_17 {dimension_numbers = #tpu.dot_dimension_numbers<[1], [0], [0], [1], [0, 0, 1, 1], [], []>} : vector<8x32xbf16>, vector<32x128xbf16>, vector<8x128xf32> -> vector<8x128xf32>
    %36 = arith.addf %33, %35 : vector<8x128xf32>
    %37 = arith.negf %36 : vector<8x128xf32>
    %38 = math.exp %37 : vector<8x128xf32>
    %cst_18 = arith.constant 1.000000e+00 : f32
    %39 = vector.broadcast %cst_18 : f32 to vector<8x128xf32>
    %40 = arith.addf %39, %38 : vector<8x128xf32>
    %41 = arith.divf %39, %40 : vector<8x128xf32>
    %42 = vector.extract_strided_slice %36 {offsets = [0, 64], sizes = [8, 32], strides = [1, 1]} : vector<8x128xf32> to vector<8x32xf32>
    %43 = math.tanh %42 : vector<8x32xf32>
    %44 = vector.extract_strided_slice %41 {offsets = [0, 32], sizes = [8, 32], strides = [1, 1]} : vector<8x128xf32> to vector<8x32xf32>
    %45 = arith.mulf %44, %21 : vector<8x32xf32>
    %46 = vector.extract_strided_slice %41 {offsets = [0, 0], sizes = [8, 32], strides = [1, 1]} : vector<8x128xf32> to vector<8x32xf32>
    %47 = arith.mulf %46, %43 : vector<8x32xf32>
    %48 = arith.addf %45, %47 : vector<8x32xf32>
    %49 = vector.extract_strided_slice %41 {offsets = [0, 96], sizes = [8, 32], strides = [1, 1]} : vector<8x128xf32> to vector<8x32xf32>
    %50 = math.tanh %48 : vector<8x32xf32>
    %51 = arith.mulf %49, %50 : vector<8x32xf32>
    %52 = arith.truncf %51 : vector<8x32xf32> to vector<8x32xbf16>
    %cst_19 = arith.constant dense<0.000000e+00> : vector<8x128xf32>
    %53 = tpu.matmul %52, %1, %cst_19 {dimension_numbers = #tpu.dot_dimension_numbers<[1], [0], [0], [1], [0, 0, 1, 1], [], []>} : vector<8x32xbf16>, vector<32x128xbf16>, vector<8x128xf32> -> vector<8x128xf32>
    %54 = vector.broadcast %2 : vector<1x128xf32> to vector<8x128xf32>
    %55 = arith.addf %53, %54 : vector<8x128xf32>
    %c1_20 = arith.constant 1 : index
    %c0_21 = arith.constant 0 : index
    %c0_22 = arith.constant 0 : index
    %56 = vector.load %arg9[%c1_20, %c0_21, %c0_22] : memref<5x8x128xf32, #tpu.memory_space<vmem>>, vector<1x8x128xf32>
    %57 = vector.shape_cast %56 : vector<1x8x128xf32> to vector<8x128xf32>
    %58 = vector.shape_cast %55 : vector<8x128xf32> to vector<1x8x128xf32>
    tpu.vector_store %arg9[%c1_20, %c0_21, %c0_22], %58 {strides = array<i32>} : memref<5x8x128xf32, #tpu.memory_space<vmem>>, vector<1x8x128xf32>,
    %c2 = arith.constant 2 : index
    %c0_23 = arith.constant 0 : index
    %c0_24 = arith.constant 0 : index
    %59 = vector.load %arg1[%c2, %c0_23, %c0_24] : memref<5x8x128xf32, #tpu.memory_space<vmem>>, vector<1x8x128xf32>
    %60 = vector.shape_cast %59 : vector<1x8x128xf32> to vector<8x128xf32>
    %61 = arith.truncf %51 : vector<8x32xf32> to vector<8x32xbf16>
    %cst_25 = arith.constant dense<0.000000e+00> : vector<8x128xf32>
    %62 = tpu.matmul %61, %0, %cst_25 {dimension_numbers = #tpu.dot_dimension_numbers<[1], [0], [0], [1], [0, 0, 1, 1], [], []>} : vector<8x32xbf16>, vector<32x128xbf16>, vector<8x128xf32> -> vector<8x128xf32>
    %63 = arith.addf %60, %62 : vector<8x128xf32>
    %64 = arith.negf %63 : vector<8x128xf32>
    %65 = math.exp %64 : vector<8x128xf32>
    %cst_26 = arith.constant 1.000000e+00 : f32
    %66 = vector.broadcast %cst_26 : f32 to vector<8x128xf32>
    %67 = arith.addf %66, %65 : vector<8x128xf32>
    %68 = arith.divf %66, %67 : vector<8x128xf32>
    %69 = vector.extract_strided_slice %63 {offsets = [0, 64], sizes = [8, 32], strides = [1, 1]} : vector<8x128xf32> to vector<8x32xf32>
    %70 = math.tanh %69 : vector<8x32xf32>
    %71 = vector.extract_strided_slice %68 {offsets = [0, 32], sizes = [8, 32], strides = [1, 1]} : vector<8x128xf32> to vector<8x32xf32>
    %72 = arith.mulf %71, %48 : vector<8x32xf32>
    %73 = vector.extract_strided_slice %68 {offsets = [0, 0], sizes = [8, 32], strides = [1, 1]} : vector<8x128xf32> to vector<8x32xf32>
    %74 = arith.mulf %73, %70 : vector<8x32xf32>
    %75 = arith.addf %72, %74 : vector<8x32xf32>
    %76 = vector.extract_strided_slice %68 {offsets = [0, 96], sizes = [8, 32], strides = [1, 1]} : vector<8x128xf32> to vector<8x32xf32>
    %77 = math.tanh %75 : vector<8x32xf32>
    %78 = arith.mulf %76, %77 : vector<8x32xf32>
    %79 = arith.truncf %78 : vector<8x32xf32> to vector<8x32xbf16>
    %cst_27 = arith.constant dense<0.000000e+00> : vector<8x128xf32>
    %80 = tpu.matmul %79, %1, %cst_27 {dimension_numbers = #tpu.dot_dimension_numbers<[1], [0], [0], [1], [0, 0, 1, 1], [], []>} : vector<8x32xbf16>, vector<32x128xbf16>, vector<8x128xf32> -> vector<8x128xf32>
    %81 = vector.broadcast %2 : vector<1x128xf32> to vector<8x128xf32>
    %82 = arith.addf %80, %81 : vector<8x128xf32>
    %c2_28 = arith.constant 2 : index
    %c0_29 = arith.constant 0 : index
    %c0_30 = arith.constant 0 : index
    %83 = vector.load %arg9[%c2_28, %c0_29, %c0_30] : memref<5x8x128xf32, #tpu.memory_space<vmem>>, vector<1x8x128xf32>
    %84 = vector.shape_cast %83 : vector<1x8x128xf32> to vector<8x128xf32>
    %85 = vector.shape_cast %82 : vector<8x128xf32> to vector<1x8x128xf32>
    tpu.vector_store %arg9[%c2_28, %c0_29, %c0_30], %85 {strides = array<i32>} : memref<5x8x128xf32, #tpu.memory_space<vmem>>, vector<1x8x128xf32>,
    %c3 = arith.constant 3 : index
    %c0_31 = arith.constant 0 : index
    %c0_32 = arith.constant 0 : index
    %86 = vector.load %arg1[%c3, %c0_31, %c0_32] : memref<5x8x128xf32, #tpu.memory_space<vmem>>, vector<1x8x128xf32>
    %87 = vector.shape_cast %86 : vector<1x8x128xf32> to vector<8x128xf32>
    %88 = arith.truncf %78 : vector<8x32xf32> to vector<8x32xbf16>
    %cst_33 = arith.constant dense<0.000000e+00> : vector<8x128xf32>
    %89 = tpu.matmul %88, %0, %cst_33 {dimension_numbers = #tpu.dot_dimension_numbers<[1], [0], [0], [1], [0, 0, 1, 1], [], []>} : vector<8x32xbf16>, vector<32x128xbf16>, vector<8x128xf32> -> vector<8x128xf32>
    %90 = arith.addf %87, %89 : vector<8x128xf32>
    %91 = arith.negf %90 : vector<8x128xf32>
    %92 = math.exp %91 : vector<8x128xf32>
    %cst_34 = arith.constant 1.000000e+00 : f32
    %93 = vector.broadcast %cst_34 : f32 to vector<8x128xf32>
    %94 = arith.addf %93, %92 : vector<8x128xf32>
    %95 = arith.divf %93, %94 : vector<8x128xf32>
    %96 = vector.extract_strided_slice %90 {offsets = [0, 64], sizes = [8, 32], strides = [1, 1]} : vector<8x128xf32> to vector<8x32xf32>
    %97 = math.tanh %96 : vector<8x32xf32>
    %98 = vector.extract_strided_slice %95 {offsets = [0, 32], sizes = [8, 32], strides = [1, 1]} : vector<8x128xf32> to vector<8x32xf32>
    %99 = arith.mulf %98, %75 : vector<8x32xf32>
    %100 = vector.extract_strided_slice %95 {offsets = [0, 0], sizes = [8, 32], strides = [1, 1]} : vector<8x128xf32> to vector<8x32xf32>
    %101 = arith.mulf %100, %97 : vector<8x32xf32>
    %102 = arith.addf %99, %101 : vector<8x32xf32>
    %103 = vector.extract_strided_slice %95 {offsets = [0, 96], sizes = [8, 32], strides = [1, 1]} : vector<8x128xf32> to vector<8x32xf32>
    %104 = math.tanh %102 : vector<8x32xf32>
    %105 = arith.mulf %103, %104 : vector<8x32xf32>
    %106 = arith.truncf %105 : vector<8x32xf32> to vector<8x32xbf16>
    %cst_35 = arith.constant dense<0.000000e+00> : vector<8x128xf32>
    %107 = tpu.matmul %106, %1, %cst_35 {dimension_numbers = #tpu.dot_dimension_numbers<[1], [0], [0], [1], [0, 0, 1, 1], [], []>} : vector<8x32xbf16>, vector<32x128xbf16>, vector<8x128xf32> -> vector<8x128xf32>
    %108 = vector.broadcast %2 : vector<1x128xf32> to vector<8x128xf32>
    %109 = arith.addf %107, %108 : vector<8x128xf32>
    %c3_36 = arith.constant 3 : index
    %c0_37 = arith.constant 0 : index
    %c0_38 = arith.constant 0 : index
    %110 = vector.load %arg9[%c3_36, %c0_37, %c0_38] : memref<5x8x128xf32, #tpu.memory_space<vmem>>, vector<1x8x128xf32>
    %111 = vector.shape_cast %110 : vector<1x8x128xf32> to vector<8x128xf32>
    %112 = vector.shape_cast %109 : vector<8x128xf32> to vector<1x8x128xf32>
    tpu.vector_store %arg9[%c3_36, %c0_37, %c0_38], %112 {strides = array<i32>} : memref<5x8x128xf32, #tpu.memory_space<vmem>>, vector<1x8x128xf32>,
    %c4 = arith.constant 4 : index
    %c0_39 = arith.constant 0 : index
    %c0_40 = arith.constant 0 : index
    %113 = vector.load %arg1[%c4, %c0_39, %c0_40] : memref<5x8x128xf32, #tpu.memory_space<vmem>>, vector<1x8x128xf32>
    %114 = vector.shape_cast %113 : vector<1x8x128xf32> to vector<8x128xf32>
    %115 = arith.truncf %105 : vector<8x32xf32> to vector<8x32xbf16>
    %cst_41 = arith.constant dense<0.000000e+00> : vector<8x128xf32>
    %116 = tpu.matmul %115, %0, %cst_41 {dimension_numbers = #tpu.dot_dimension_numbers<[1], [0], [0], [1], [0, 0, 1, 1], [], []>} : vector<8x32xbf16>, vector<32x128xbf16>, vector<8x128xf32> -> vector<8x128xf32>
    %117 = arith.addf %114, %116 : vector<8x128xf32>
    %118 = arith.negf %117 : vector<8x128xf32>
    %119 = math.exp %118 : vector<8x128xf32>
    %cst_42 = arith.constant 1.000000e+00 : f32
    %120 = vector.broadcast %cst_42 : f32 to vector<8x128xf32>
    %121 = arith.addf %120, %119 : vector<8x128xf32>
    %122 = arith.divf %120, %121 : vector<8x128xf32>
    %123 = vector.extract_strided_slice %117 {offsets = [0, 64], sizes = [8, 32], strides = [1, 1]} : vector<8x128xf32> to vector<8x32xf32>
    %124 = math.tanh %123 : vector<8x32xf32>
    %125 = vector.extract_strided_slice %122 {offsets = [0, 32], sizes = [8, 32], strides = [1, 1]} : vector<8x128xf32> to vector<8x32xf32>
    %126 = arith.mulf %125, %102 : vector<8x32xf32>
    %127 = vector.extract_strided_slice %122 {offsets = [0, 0], sizes = [8, 32], strides = [1, 1]} : vector<8x128xf32> to vector<8x32xf32>
    %128 = arith.mulf %127, %124 : vector<8x32xf32>
    %129 = arith.addf %126, %128 : vector<8x32xf32>
    %130 = vector.extract_strided_slice %122 {offsets = [0, 96], sizes = [8, 32], strides = [1, 1]} : vector<8x128xf32> to vector<8x32xf32>
    %131 = math.tanh %129 : vector<8x32xf32>
    %132 = arith.mulf %130, %131 : vector<8x32xf32>
    %133 = arith.truncf %132 : vector<8x32xf32> to vector<8x32xbf16>
    %cst_43 = arith.constant dense<0.000000e+00> : vector<8x128xf32>
    %134 = tpu.matmul %133, %1, %cst_43 {dimension_numbers = #tpu.dot_dimension_numbers<[1], [0], [0], [1], [0, 0, 1, 1], [], []>} : vector<8x32xbf16>, vector<32x128xbf16>, vector<8x128xf32> -> vector<8x128xf32>
    %135 = vector.broadcast %2 : vector<1x128xf32> to vector<8x128xf32>
    %136 = arith.addf %134, %135 : vector<8x128xf32>
    %c4_44 = arith.constant 4 : index
    %c0_45 = arith.constant 0 : index
    %c0_46 = arith.constant 0 : index
    %137 = vector.load %arg9[%c4_44, %c0_45, %c0_46] : memref<5x8x128xf32, #tpu.memory_space<vmem>>, vector<1x8x128xf32>
    %138 = vector.shape_cast %137 : vector<1x8x128xf32> to vector<8x128xf32>
    %139 = vector.shape_cast %136 : vector<8x128xf32> to vector<1x8x128xf32>
    tpu.vector_store %arg9[%c4_44, %c0_45, %c0_46], %139 {strides = array<i32>} : memref<5x8x128xf32, #tpu.memory_space<vmem>>, vector<1x8x128xf32>,
    %c0_47 = arith.constant 0 : index
    %c0_48 = arith.constant 0 : index
    %140 = vector.load %arg3[%c0_47, %c0_48] : memref<32x128xbf16, #tpu.memory_space<vmem>>, vector<32x128xbf16>
    %c0_49 = arith.constant 0 : index
    %c0_50 = arith.constant 0 : index
    %141 = vector.load %arg6[%c0_49, %c0_50] : memref<32x2xbf16, #tpu.memory_space<vmem>>, vector<32x2xbf16>
    %cst_51 = arith.constant 0.000000e+00 : f32
    %142 = vector.broadcast %cst_51 : f32 to vector<8x32xf32>
    %cst_52 = arith.constant 0.000000e+00 : f32
    %143 = vector.broadcast %cst_52 : f32 to vector<8x32xf32>
    %c0_53 = arith.constant 0 : index
    %c0_54 = arith.constant 0 : index
    %c0_55 = arith.constant 0 : index
    %144 = vector.load %arg9[%c0_53, %c0_54, %c0_55] : memref<5x8x128xf32, #tpu.memory_space<vmem>>, vector<1x8x128xf32>
    %145 = vector.shape_cast %144 : vector<1x8x128xf32> to vector<8x128xf32>
    %146 = arith.truncf %142 : vector<8x32xf32> to vector<8x32xbf16>
    %cst_56 = arith.constant dense<0.000000e+00> : vector<8x128xf32>
    %147 = tpu.matmul %146, %140, %cst_56 {dimension_numbers = #tpu.dot_dimension_numbers<[1], [0], [0], [1], [0, 0, 1, 1], [], []>} : vector<8x32xbf16>, vector<32x128xbf16>, vector<8x128xf32> -> vector<8x128xf32>
    %148 = arith.addf %145, %147 : vector<8x128xf32>
    %149 = arith.negf %148 : vector<8x128xf32>
    %150 = math.exp %149 : vector<8x128xf32>
    %cst_57 = arith.constant 1.000000e+00 : f32
    %151 = vector.broadcast %cst_57 : f32 to vector<8x128xf32>
    %152 = arith.addf %151, %150 : vector<8x128xf32>
    %153 = arith.divf %151, %152 : vector<8x128xf32>
    %154 = vector.extract_strided_slice %148 {offsets = [0, 64], sizes = [8, 32], strides = [1, 1]} : vector<8x128xf32> to vector<8x32xf32>
    %155 = math.tanh %154 : vector<8x32xf32>
    %156 = vector.extract_strided_slice %153 {offsets = [0, 32], sizes = [8, 32], strides = [1, 1]} : vector<8x128xf32> to vector<8x32xf32>
    %157 = arith.mulf %156, %143 : vector<8x32xf32>
    %158 = vector.extract_strided_slice %153 {offsets = [0, 0], sizes = [8, 32], strides = [1, 1]} : vector<8x128xf32> to vector<8x32xf32>
    %159 = arith.mulf %158, %155 : vector<8x32xf32>
    %160 = arith.addf %157, %159 : vector<8x32xf32>
    %161 = vector.extract_strided_slice %153 {offsets = [0, 96], sizes = [8, 32], strides = [1, 1]} : vector<8x128xf32> to vector<8x32xf32>
    %162 = math.tanh %160 : vector<8x32xf32>
    %163 = arith.mulf %161, %162 : vector<8x32xf32>
    %164 = arith.truncf %163 : vector<8x32xf32> to vector<8x32xbf16>
    %cst_58 = arith.constant dense<0.000000e+00> : vector<8x2xf32>
    %165 = tpu.matmul %164, %141, %cst_58 {dimension_numbers = #tpu.dot_dimension_numbers<[1], [0], [0], [1], [0, 0, 1, 1], [], []>} : vector<8x32xbf16>, vector<32x2xbf16>, vector<8x2xf32> -> vector<8x2xf32>
    %c1_59 = arith.constant 1 : index
    %c0_60 = arith.constant 0 : index
    %c0_61 = arith.constant 0 : index
    %166 = vector.load %arg9[%c1_59, %c0_60, %c0_61] : memref<5x8x128xf32, #tpu.memory_space<vmem>>, vector<1x8x128xf32>
    %167 = vector.shape_cast %166 : vector<1x8x128xf32> to vector<8x128xf32>
    %168 = arith.truncf %163 : vector<8x32xf32> to vector<8x32xbf16>
    %cst_62 = arith.constant dense<0.000000e+00> : vector<8x128xf32>
    %169 = tpu.matmul %168, %140, %cst_62 {dimension_numbers = #tpu.dot_dimension_numbers<[1], [0], [0], [1], [0, 0, 1, 1], [], []>} : vector<8x32xbf16>, vector<32x128xbf16>, vector<8x128xf32> -> vector<8x128xf32>
    %170 = arith.addf %167, %169 : vector<8x128xf32>
    %171 = arith.negf %170 : vector<8x128xf32>
    %172 = math.exp %171 : vector<8x128xf32>
    %cst_63 = arith.constant 1.000000e+00 : f32
    %173 = vector.broadcast %cst_63 : f32 to vector<8x128xf32>
    %174 = arith.addf %173, %172 : vector<8x128xf32>
    %175 = arith.divf %173, %174 : vector<8x128xf32>
    %176 = vector.extract_strided_slice %170 {offsets = [0, 64], sizes = [8, 32], strides = [1, 1]} : vector<8x128xf32> to vector<8x32xf32>
    %177 = math.tanh %176 : vector<8x32xf32>
    %178 = vector.extract_strided_slice %175 {offsets = [0, 32], sizes = [8, 32], strides = [1, 1]} : vector<8x128xf32> to vector<8x32xf32>
    %179 = arith.mulf %178, %160 : vector<8x32xf32>
    %180 = vector.extract_strided_slice %175 {offsets = [0, 0], sizes = [8, 32], strides = [1, 1]} : vector<8x128xf32> to vector<8x32xf32>
    %181 = arith.mulf %180, %177 : vector<8x32xf32>
    %182 = arith.addf %179, %181 : vector<8x32xf32>
    %183 = vector.extract_strided_slice %175 {offsets = [0, 96], sizes = [8, 32], strides = [1, 1]} : vector<8x128xf32> to vector<8x32xf32>
    %184 = math.tanh %182 : vector<8x32xf32>
    %185 = arith.mulf %183, %184 : vector<8x32xf32>
    %186 = arith.truncf %185 : vector<8x32xf32> to vector<8x32xbf16>
    %cst_64 = arith.constant dense<0.000000e+00> : vector<8x2xf32>
    %187 = tpu.matmul %186, %141, %cst_64 {dimension_numbers = #tpu.dot_dimension_numbers<[1], [0], [0], [1], [0, 0, 1, 1], [], []>} : vector<8x32xbf16>, vector<32x2xbf16>, vector<8x2xf32> -> vector<8x2xf32>
    %c2_65 = arith.constant 2 : index
    %c0_66 = arith.constant 0 : index
    %c0_67 = arith.constant 0 : index
    %188 = vector.load %arg9[%c2_65, %c0_66, %c0_67] : memref<5x8x128xf32, #tpu.memory_space<vmem>>, vector<1x8x128xf32>
    %189 = vector.shape_cast %188 : vector<1x8x128xf32> to vector<8x128xf32>
    %190 = arith.truncf %185 : vector<8x32xf32> to vector<8x32xbf16>
    %cst_68 = arith.constant dense<0.000000e+00> : vector<8x128xf32>
    %191 = tpu.matmul %190, %140, %cst_68 {dimension_numbers = #tpu.dot_dimension_numbers<[1], [0], [0], [1], [0, 0, 1, 1], [], []>} : vector<8x32xbf16>, vector<32x128xbf16>, vector<8x128xf32> -> vector<8x128xf32>
    %192 = arith.addf %189, %191 : vector<8x128xf32>
    %193 = arith.negf %192 : vector<8x128xf32>
    %194 = math.exp %193 : vector<8x128xf32>
    %cst_69 = arith.constant 1.000000e+00 : f32
    %195 = vector.broadcast %cst_69 : f32 to vector<8x128xf32>
    %196 = arith.addf %195, %194 : vector<8x128xf32>
    %197 = arith.divf %195, %196 : vector<8x128xf32>
    %198 = vector.extract_strided_slice %192 {offsets = [0, 64], sizes = [8, 32], strides = [1, 1]} : vector<8x128xf32> to vector<8x32xf32>
    %199 = math.tanh %198 : vector<8x32xf32>
    %200 = vector.extract_strided_slice %197 {offsets = [0, 32], sizes = [8, 32], strides = [1, 1]} : vector<8x128xf32> to vector<8x32xf32>
    %201 = arith.mulf %200, %182 : vector<8x32xf32>
    %202 = vector.extract_strided_slice %197 {offsets = [0, 0], sizes = [8, 32], strides = [1, 1]} : vector<8x128xf32> to vector<8x32xf32>
    %203 = arith.mulf %202, %199 : vector<8x32xf32>
    %204 = arith.addf %201, %203 : vector<8x32xf32>
    %205 = vector.extract_strided_slice %197 {offsets = [0, 96], sizes = [8, 32], strides = [1, 1]} : vector<8x128xf32> to vector<8x32xf32>
    %206 = math.tanh %204 : vector<8x32xf32>
    %207 = arith.mulf %205, %206 : vector<8x32xf32>
    %208 = arith.truncf %207 : vector<8x32xf32> to vector<8x32xbf16>
    %cst_70 = arith.constant dense<0.000000e+00> : vector<8x2xf32>
    %209 = tpu.matmul %208, %141, %cst_70 {dimension_numbers = #tpu.dot_dimension_numbers<[1], [0], [0], [1], [0, 0, 1, 1], [], []>} : vector<8x32xbf16>, vector<32x2xbf16>, vector<8x2xf32> -> vector<8x2xf32>
    %c3_71 = arith.constant 3 : index
    %c0_72 = arith.constant 0 : index
    %c0_73 = arith.constant 0 : index
    %210 = vector.load %arg9[%c3_71, %c0_72, %c0_73] : memref<5x8x128xf32, #tpu.memory_space<vmem>>, vector<1x8x128xf32>
    %211 = vector.shape_cast %210 : vector<1x8x128xf32> to vector<8x128xf32>
    %212 = arith.truncf %207 : vector<8x32xf32> to vector<8x32xbf16>
    %cst_74 = arith.constant dense<0.000000e+00> : vector<8x128xf32>
    %213 = tpu.matmul %212, %140, %cst_74 {dimension_numbers = #tpu.dot_dimension_numbers<[1], [0], [0], [1], [0, 0, 1, 1], [], []>} : vector<8x32xbf16>, vector<32x128xbf16>, vector<8x128xf32> -> vector<8x128xf32>
    %214 = arith.addf %211, %213 : vector<8x128xf32>
    %215 = arith.negf %214 : vector<8x128xf32>
    %216 = math.exp %215 : vector<8x128xf32>
    %cst_75 = arith.constant 1.000000e+00 : f32
    %217 = vector.broadcast %cst_75 : f32 to vector<8x128xf32>
    %218 = arith.addf %217, %216 : vector<8x128xf32>
    %219 = arith.divf %217, %218 : vector<8x128xf32>
    %220 = vector.extract_strided_slice %214 {offsets = [0, 64], sizes = [8, 32], strides = [1, 1]} : vector<8x128xf32> to vector<8x32xf32>
    %221 = math.tanh %220 : vector<8x32xf32>
    %222 = vector.extract_strided_slice %219 {offsets = [0, 32], sizes = [8, 32], strides = [1, 1]} : vector<8x128xf32> to vector<8x32xf32>
    %223 = arith.mulf %222, %204 : vector<8x32xf32>
    %224 = vector.extract_strided_slice %219 {offsets = [0, 0], sizes = [8, 32], strides = [1, 1]} : vector<8x128xf32> to vector<8x32xf32>
    %225 = arith.mulf %224, %221 : vector<8x32xf32>
    %226 = arith.addf %223, %225 : vector<8x32xf32>
    %227 = vector.extract_strided_slice %219 {offsets = [0, 96], sizes = [8, 32], strides = [1, 1]} : vector<8x128xf32> to vector<8x32xf32>
    %228 = math.tanh %226 : vector<8x32xf32>
    %229 = arith.mulf %227, %228 : vector<8x32xf32>
    %230 = arith.truncf %229 : vector<8x32xf32> to vector<8x32xbf16>
    %cst_76 = arith.constant dense<0.000000e+00> : vector<8x2xf32>
    %231 = tpu.matmul %230, %141, %cst_76 {dimension_numbers = #tpu.dot_dimension_numbers<[1], [0], [0], [1], [0, 0, 1, 1], [], []>} : vector<8x32xbf16>, vector<32x2xbf16>, vector<8x2xf32> -> vector<8x2xf32>
    %c4_77 = arith.constant 4 : index
    %c0_78 = arith.constant 0 : index
    %c0_79 = arith.constant 0 : index
    %232 = vector.load %arg9[%c4_77, %c0_78, %c0_79] : memref<5x8x128xf32, #tpu.memory_space<vmem>>, vector<1x8x128xf32>
    %233 = vector.shape_cast %232 : vector<1x8x128xf32> to vector<8x128xf32>
    %234 = arith.truncf %229 : vector<8x32xf32> to vector<8x32xbf16>
    %cst_80 = arith.constant dense<0.000000e+00> : vector<8x128xf32>
    %235 = tpu.matmul %234, %140, %cst_80 {dimension_numbers = #tpu.dot_dimension_numbers<[1], [0], [0], [1], [0, 0, 1, 1], [], []>} : vector<8x32xbf16>, vector<32x128xbf16>, vector<8x128xf32> -> vector<8x128xf32>
    %236 = arith.addf %233, %235 : vector<8x128xf32>
    %237 = arith.negf %236 : vector<8x128xf32>
    %238 = math.exp %237 : vector<8x128xf32>
    %cst_81 = arith.constant 1.000000e+00 : f32
    %239 = vector.broadcast %cst_81 : f32 to vector<8x128xf32>
    %240 = arith.addf %239, %238 : vector<8x128xf32>
    %241 = arith.divf %239, %240 : vector<8x128xf32>
    %242 = vector.extract_strided_slice %236 {offsets = [0, 64], sizes = [8, 32], strides = [1, 1]} : vector<8x128xf32> to vector<8x32xf32>
    %243 = math.tanh %242 : vector<8x32xf32>
    %244 = vector.extract_strided_slice %241 {offsets = [0, 32], sizes = [8, 32], strides = [1, 1]} : vector<8x128xf32> to vector<8x32xf32>
    %245 = arith.mulf %244, %226 : vector<8x32xf32>
    %246 = vector.extract_strided_slice %241 {offsets = [0, 0], sizes = [8, 32], strides = [1, 1]} : vector<8x128xf32> to vector<8x32xf32>
    %247 = arith.mulf %246, %243 : vector<8x32xf32>
    %248 = arith.addf %245, %247 : vector<8x32xf32>
    %249 = vector.extract_strided_slice %241 {offsets = [0, 96], sizes = [8, 32], strides = [1, 1]} : vector<8x128xf32> to vector<8x32xf32>
    %250 = math.tanh %248 : vector<8x32xf32>
    %251 = arith.mulf %249, %250 : vector<8x32xf32>
    %252 = arith.truncf %251 : vector<8x32xf32> to vector<8x32xbf16>
    %cst_82 = arith.constant dense<0.000000e+00> : vector<8x2xf32>
    %253 = tpu.matmul %252, %141, %cst_82 {dimension_numbers = #tpu.dot_dimension_numbers<[1], [0], [0], [1], [0, 0, 1, 1], [], []>} : vector<8x32xbf16>, vector<32x2xbf16>, vector<8x2xf32> -> vector<8x2xf32>
    %254 = vector.extract_strided_slice %165 {offsets = [0, 0], sizes = [8, 1], strides = [1, 1]} : vector<8x2xf32> to vector<8x1xf32>
    %255 = vector.extract_strided_slice %187 {offsets = [0, 0], sizes = [8, 1], strides = [1, 1]} : vector<8x2xf32> to vector<8x1xf32>
    %256 = vector.extract_strided_slice %209 {offsets = [0, 0], sizes = [8, 1], strides = [1, 1]} : vector<8x2xf32> to vector<8x1xf32>
    %257 = vector.extract_strided_slice %231 {offsets = [0, 0], sizes = [8, 1], strides = [1, 1]} : vector<8x2xf32> to vector<8x1xf32>
    %258 = vector.extract_strided_slice %253 {offsets = [0, 0], sizes = [8, 1], strides = [1, 1]} : vector<8x2xf32> to vector<8x1xf32>
    %259 = vector.extract_strided_slice %165 {offsets = [0, 1], sizes = [8, 1], strides = [1, 1]} : vector<8x2xf32> to vector<8x1xf32>
    %260 = vector.extract_strided_slice %187 {offsets = [0, 1], sizes = [8, 1], strides = [1, 1]} : vector<8x2xf32> to vector<8x1xf32>
    %261 = vector.extract_strided_slice %209 {offsets = [0, 1], sizes = [8, 1], strides = [1, 1]} : vector<8x2xf32> to vector<8x1xf32>
    %262 = vector.extract_strided_slice %231 {offsets = [0, 1], sizes = [8, 1], strides = [1, 1]} : vector<8x2xf32> to vector<8x1xf32>
    %263 = vector.extract_strided_slice %253 {offsets = [0, 1], sizes = [8, 1], strides = [1, 1]} : vector<8x2xf32> to vector<8x1xf32>
    %264 = arith.maximumf %254, %255 : vector<8x1xf32>
    %265 = arith.maximumf %264, %256 : vector<8x1xf32>
    %266 = arith.maximumf %265, %257 : vector<8x1xf32>
    %267 = arith.maximumf %266, %258 : vector<8x1xf32>
    %cst_83 = arith.constant 0.000000e+00 : f32
    %268 = vector.broadcast %cst_83 : f32 to vector<8x1xf32>
    %cst_84 = arith.constant 0.000000e+00 : f32
    %269 = vector.broadcast %cst_84 : f32 to vector<8x1xf32>
    %270 = arith.subf %254, %267 : vector<8x1xf32>
    %271 = math.exp %270 : vector<8x1xf32>
    %272 = arith.addf %268, %271 : vector<8x1xf32>
    %273 = arith.mulf %271, %259 : vector<8x1xf32>
    %274 = arith.addf %269, %273 : vector<8x1xf32>
    %275 = arith.subf %255, %267 : vector<8x1xf32>
    %276 = math.exp %275 : vector<8x1xf32>
    %277 = arith.addf %272, %276 : vector<8x1xf32>
    %278 = arith.mulf %276, %260 : vector<8x1xf32>
    %279 = arith.addf %274, %278 : vector<8x1xf32>
    %280 = arith.subf %256, %267 : vector<8x1xf32>
    %281 = math.exp %280 : vector<8x1xf32>
    %282 = arith.addf %277, %281 : vector<8x1xf32>
    %283 = arith.mulf %281, %261 : vector<8x1xf32>
    %284 = arith.addf %279, %283 : vector<8x1xf32>
    %285 = arith.subf %257, %267 : vector<8x1xf32>
    %286 = math.exp %285 : vector<8x1xf32>
    %287 = arith.addf %282, %286 : vector<8x1xf32>
    %288 = arith.mulf %286, %262 : vector<8x1xf32>
    %289 = arith.addf %284, %288 : vector<8x1xf32>
    %290 = arith.subf %258, %267 : vector<8x1xf32>
    %291 = math.exp %290 : vector<8x1xf32>
    %292 = arith.addf %287, %291 : vector<8x1xf32>
    %293 = arith.mulf %291, %263 : vector<8x1xf32>
    %294 = arith.addf %289, %293 : vector<8x1xf32>
    %295 = tpu.reciprocal %292 {approx = true} : vector<8x1xf32> -> vector<8x1xf32>
    %296 = arith.mulf %294, %295 : vector<8x1xf32>
    %c0_85 = arith.constant 0 : index
    %c0_86 = arith.constant 0 : index
    %297 = vector.load %arg7[%c0_85, %c0_86] : memref<1x1xf32, #tpu.memory_space<vmem>>, vector<1x1xf32>
    %298 = vector.broadcast %297 : vector<1x1xf32> to vector<8x1xf32>
    %299 = arith.addf %296, %298 : vector<8x1xf32>
    %c0_87 = arith.constant 0 : index
    %c0_88 = arith.constant 0 : index
    %300 = vector.load %arg8[%c0_87, %c0_88] : memref<8x1xf32, #tpu.memory_space<vmem>>, vector<8x1xf32>
    tpu.vector_store %arg8[%c0_87, %c0_88], %299 {strides = array<i32>} : memref<8x1xf32, #tpu.memory_space<vmem>>, vector<8x1xf32>,
    return
  }
  func.func @transform_0(%arg0: i32) -> (i32, i32, i32) {
    %c0_i32 = arith.constant 0 : i32
    %c0_i32_0 = arith.constant 0 : i32
    %c0_i32_1 = arith.constant 0 : i32
    return %c0_i32, %arg0, %c0_i32_0 : i32, i32, i32
  }
  func.func @transform_1(%arg0: i32) -> (i32, i32) {
    %c0_i32 = arith.constant 0 : i32
    %c0_i32_0 = arith.constant 0 : i32
    %c0_i32_1 = arith.constant 0 : i32
    return %c0_i32, %c0_i32_0 : i32, i32
  }
  func.func @transform_2(%arg0: i32) -> (i32, i32) {
    %c0_i32 = arith.constant 0 : i32
    %c0_i32_0 = arith.constant 0 : i32
    %c0_i32_1 = arith.constant 0 : i32
    return %c0_i32, %c0_i32_0 : i32, i32
  }
  func.func @transform_3(%arg0: i32) -> (i32, i32) {
    %c0_i32 = arith.constant 0 : i32
    %c0_i32_0 = arith.constant 0 : i32
    %c0_i32_1 = arith.constant 0 : i32
    return %c0_i32, %c0_i32_0 : i32, i32
  }
  func.func @transform_4(%arg0: i32) -> (i32, i32) {
    %c0_i32 = arith.constant 0 : i32
    %c0_i32_0 = arith.constant 0 : i32
    %c0_i32_1 = arith.constant 0 : i32
    return %c0_i32, %c0_i32_0 : i32, i32
  }
  func.func @transform_5(%arg0: i32) -> (i32, i32) {
    %c0_i32 = arith.constant 0 : i32
    %c0_i32_0 = arith.constant 0 : i32
    %c0_i32_1 = arith.constant 0 : i32
    return %c0_i32, %c0_i32_0 : i32, i32
  }
  func.func @transform_6(%arg0: i32) -> (i32, i32) {
    %c0_i32 = arith.constant 0 : i32
    %c0_i32_0 = arith.constant 0 : i32
    %c0_i32_1 = arith.constant 0 : i32
    return %c0_i32, %c0_i32_0 : i32, i32
  }
  func.func @transform_7(%arg0: i32) -> (i32, i32) {
    %c0_i32 = arith.constant 0 : i32
    %c0_i32_0 = arith.constant 0 : i32
    return %arg0, %c0_i32 : i32, i32
  }
}

</mosaic_0001>

<llo_original>
// kernel: tpu_custom_call.1
$region0: #{tpu_custom_call.1}
  #allocation0 [shape = 'u32[]', space=smem, size = 0x4, offset = 0x4, fixed_abs, tag = 'smem constant byte address 0x4 - core index']
  #allocation1 [shape = 'u32[72,128]{1,0:T(1,128)}', space=vmem, size = 0x9000, scoped, tag = 'internal scratch']
  #allocation2 [shape = 'f32[5,8,128]{2,1,0:T(8,128)}', space=vmem, size = 0x5000, scoped, tag = 'scratch operand']
  #allocation3 [shape = 'f32[1,1]{1,0:T(1,128)S(1)}', space=vmem, size = 0x200, scoped, tag = 'scoped memory for tpu_custom_call.1']
  %s0 = inlined_call_operand.hbm [shape: f32[5,16,128], index: 0, kind: input, shape index: {}]
  %s1 = inlined_call_operand.vmem [shape: bf16[32,128], index: 1, kind: input, shape index: {}]
  %s2 = inlined_call_operand.hbm [shape: bf16[32,128], index: 2, kind: input, shape index: {}]
  %s3 = inlined_call_operand.hbm [shape: bf16[32,128], index: 3, kind: input, shape index: {}]
  %s4 = inlined_call_operand.vmem [shape: f32[1,128], index: 4, kind: input, shape index: {}]
  %s5 = inlined_call_operand.vmem [shape: bf16[32,2], index: 5, kind: input, shape index: {}]
  %s6 = inlined_call_operand.<no memory space> [shape: f32[1,1], index: 6, kind: input, shape index: {}]
  %s7 = inlined_call_operand.vmem [shape: f32[16,1], index: 7, kind: output, shape index: {}]
  %s8 = sld [smem:[#allocation0]]
  $region73: #{tpu_custom_call.1} parent=0
    _
  %s10 = ssub.s32 1, %s8
  %s11 = scalar_select 0, %s10, %s8
  %v12 = vstv %s6
  %13 = vst [vmem:[#allocation3] sm:$0x1] %v12
  $region1: #{tpu_custom_call.1} parent=0
    #allocation4 [shape = 'u8[40960]{0}', space=vmem, size = 0xa000, scoped, tag = 'input window, operand 0']
    #allocation5 [shape = 's32[2]{0}', space=sflag, size = 0x8, scoped, tag = 'scoped memory for tpu_custom_call.1']
    #allocation6 [shape = 'u8[8192]{0}', space=vmem, size = 0x2000, scoped, tag = 'input window, operand 2, single buffered']
    #allocation7 [shape = 's32[1]{0}', space=sflag, size = 0x4, scoped, tag = 'scoped memory for tpu_custom_call.1']
    #allocation8 [shape = 'u8[8192]{0}', space=vmem, size = 0x2000, scoped, tag = 'input window, operand 3, single buffered']
    %14 = vsyncpa [#allocation5], 0
    %s15 = scalar_lea.sflag [#allocation5], 1
    %16 = vsyncpa %s15, 0
    %17 = vsyncpa [#allocation7], 0
    loop: start=0, step=1, limit=4
    $region2: #{tpu_custom_call.1} parent=1 // loop_pre_header
      _
    $region3: #{tpu_custom_call.1} parent=1 // loop_header
      %s19 = sphi 0, %s23
      %p20 = scmp.ge.s32.totalorder %s19, 4
      %s29 = sphi 0, %s31
      %s32 = sphi 0, %s29
      %s33 = sphi 0, %s32
      %s49 = sphi 0, %s33
      %s53 = sphi 0, %s53
      %s55 = sphi 0, %s53
      %s56 = sphi 0, %s55
      %s70 = sphi 0, %s56
      %s74 = sphi 0, %s74
      %s76 = sphi 0, %s74
      %s77 = sphi 0, %s76
      %s91 = sphi 0, %s77
      %s95 = sphi 0, %s95
      %s97 = sphi 0, %s95
      %s98 = sphi 0, %s97
      %s112 = sphi 0, %s98
      %s116 = sphi 0, %s116
      %s118 = sphi 0, %s116
      %s119 = sphi 0, %s118
      %s133 = sphi 0, %s119
      %s137 = sphi 0, %s137
      %s139 = sphi 0, %s137
      %s140 = sphi 0, %s139
      %s154 = sphi 0, %s140
      %s158 = sphi 0, %s158
      %s160 = sphi 0, %s158
      %s161 = sphi 0, %s160
      %s175 = sphi 0, %s161
      %s181 = sphi 0, %s183
      %s184 = sphi 0, %s181
      %s185 = sphi 0, %s184
      %s201 = sphi 0, %s185
    $region4: #{tpu_custom_call.1} parent=1 // loop_header_branch
      %22 = sbr.rel (%p20) target = $region8
    $region5: #{tpu_custom_call.1} parent=1 // loop_body
      %s24 = ssub.s32 %s19, 1
      %s25 = ssub.s32 %s19, 2
      %s26 = sadd.s32 %s19, 1
      %s27 = ssub.s32 %s19, %s26
      %p28 = scmp.eq.s32.totalorder %s27, 0
      %s30 = sadd.s32 %s29, 1
      %s31 = scalar_select %p28, %s29, %s30
      %p34 = pneg %p28
      %p35 = scmp.eq.s32.totalorder %s19, 1
      %p36 = por %p34, %p35
      %p37 = scmp.ne.s32.totalorder %s29, %s32
      %p38 = scmp.eq.s32.totalorder %s19, 0
      %p39 = por %p37, %p38
      %p40 = scmp.ne.s32.totalorder %s29, %s32
      %p41 = scmp.eq.s32.totalorder %s24, 1
      %p42 = por %p40, %p41
      %p43 = scmp.ne.s32.totalorder %s32, %s33
      %p44 = scmp.eq.s32.totalorder %s24, 0
      %p45 = por %p43, %p44
      %p46 = scmp.ne.s32.totalorder %s32, %s33
      %p47 = scmp.eq.s32.totalorder %s25, 1
      %p48 = por %p46, %p47
      %p50 = scmp.ne.s32.totalorder %s33, %s49
      %p51 = scmp.eq.s32.totalorder %s25, 0
      %p52 = por %p50, %p51
      %s54 = sadd.s32 %s53, 1
      %p57 = scmp.eq.s32.totalorder %s19, 1
      %p58 = scmp.ne.s32.totalorder %s53, %s55
      %p59 = scmp.eq.s32.totalorder %s19, 0
      %p60 = por %p58, %p59
      %p61 = scmp.ne.s32.totalorder %s53, %s55
      %p62 = scmp.eq.s32.totalorder %s24, 1
      %p63 = por %p61, %p62
      %p64 = scmp.ne.s32.totalorder %s55, %s56
      %p65 = scmp.eq.s32.totalorder %s24, 0
      %p66 = por %p64, %p65
      %p67 = scmp.ne.s32.totalorder %s55, %s56
      %p68 = scmp.eq.s32.totalorder %s25, 1
      %p69 = por %p67, %p68
      %p71 = scmp.ne.s32.totalorder %s56, %s70
      %p72 = scmp.eq.s32.totalorder %s25, 0
      %p73 = por %p71, %p72
      %s75 = sadd.s32 %s74, 1
      %p78 = scmp.eq.s32.totalorder %s19, 1
      %p79 = scmp.ne.s32.totalorder %s74, %s76
      %p80 = scmp.eq.s32.totalorder %s19, 0
      %p81 = por %p79, %p80
      %p82 = scmp.ne.s32.totalorder %s74, %s76
      %p83 = scmp.eq.s32.totalorder %s24, 1
      %p84 = por %p82, %p83
      %p85 = scmp.ne.s32.totalorder %s76, %s77
      %p86 = scmp.eq.s32.totalorder %s24, 0
      %p87 = por %p85, %p86
      %p88 = scmp.ne.s32.totalorder %s76, %s77
      %p89 = scmp.eq.s32.totalorder %s25, 1
      %p90 = por %p88, %p89
      %p92 = scmp.ne.s32.totalorder %s77, %s91
      %p93 = scmp.eq.s32.totalorder %s25, 0
      %p94 = por %p92, %p93
      %s96 = sadd.s32 %s95, 1
      %p99 = scmp.eq.s32.totalorder %s19, 1
      %p100 = scmp.ne.s32.totalorder %s95, %s97
      %p101 = scmp.eq.s32.totalorder %s19, 0
      %p102 = por %p100, %p101
      %p103 = scmp.ne.s32.totalorder %s95, %s97
      %p104 = scmp.eq.s32.totalorder %s24, 1
      %p105 = por %p103, %p104
      %p106 = scmp.ne.s32.totalorder %s97, %s98
      %p107 = scmp.eq.s32.totalorder %s24, 0
      %p108 = por %p106, %p107
      %p109 = scmp.ne.s32.totalorder %s97, %s98
      %p110 = scmp.eq.s32.totalorder %s25, 1
      %p111 = por %p109, %p110
      %p113 = scmp.ne.s32.totalorder %s98, %s112
      %p114 = scmp.eq.s32.totalorder %s25, 0
      %p115 = por %p113, %p114
      %s117 = sadd.s32 %s116, 1
      %p120 = scmp.eq.s32.totalorder %s19, 1
      %p121 = scmp.ne.s32.totalorder %s116, %s118
      %p122 = scmp.eq.s32.totalorder %s19, 0
      %p123 = por %p121, %p122
      %p124 = scmp.ne.s32.totalorder %s116, %s118
      %p125 = scmp.eq.s32.totalorder %s24, 1
      %p126 = por %p124, %p125
      %p127 = scmp.ne.s32.totalorder %s118, %s119
      %p128 = scmp.eq.s32.totalorder %s24, 0
      %p129 = por %p127, %p128
      %p130 = scmp.ne.s32.totalorder %s118, %s119
      %p131 = scmp.eq.s32.totalorder %s25, 1
      %p132 = por %p130, %p131
      %p134 = scmp.ne.s32.totalorder %s119, %s133
      %p135 = scmp.eq.s32.totalorder %s25, 0
      %p136 = por %p134, %p135
      %s138 = sadd.s32 %s137, 1
      %p141 = scmp.eq.s32.totalorder %s19, 1
      %p142 = scmp.ne.s32.totalorder %s137, %s139
      %p143 = scmp.eq.s32.totalorder %s19, 0
      %p144 = por %p142, %p143
      %p145 = scmp.ne.s32.totalorder %s137, %s139
      %p146 = scmp.eq.s32.totalorder %s24, 1
      %p147 = por %p145, %p146
      %p148 = scmp.ne.s32.totalorder %s139, %s140
      %p149 = scmp.eq.s32.totalorder %s24, 0
      %p150 = por %p148, %p149
      %p151 = scmp.ne.s32.totalorder %s139, %s140
      %p152 = scmp.eq.s32.totalorder %s25, 1
      %p153 = por %p151, %p152
      %p155 = scmp.ne.s32.totalorder %s140, %s154
      %p156 = scmp.eq.s32.totalorder %s25, 0
      %p157 = por %p155, %p156
      %s159 = sadd.s32 %s158, 1
      %p162 = scmp.eq.s32.totalorder %s19, 1
      %p163 = scmp.ne.s32.totalorder %s158, %s160
      %p164 = scmp.eq.s32.totalorder %s19, 0
      %p165 = por %p163, %p164
      %p166 = scmp.ne.s32.totalorder %s158, %s160
      %p167 = scmp.eq.s32.totalorder %s24, 1
      %p168 = por %p166, %p167
      %p169 = scmp.ne.s32.totalorder %s160, %s161
      %p170 = scmp.eq.s32.totalorder %s24, 0
      %p171 = por %p169, %p170
      %p172 = scmp.ne.s32.totalorder %s160, %s161
      %p173 = scmp.eq.s32.totalorder %s25, 1
      %p174 = por %p172, %p173
      %p176 = scmp.ne.s32.totalorder %s161, %s175
      %p177 = scmp.eq.s32.totalorder %s25, 0
      %p178 = por %p176, %p177
      %s179 = ssub.s32 %s19, %s26
      %p180 = scmp.eq.s32.totalorder %s179, 0
      %s182 = sadd.s32 %s181, 1
      %s183 = scalar_select %p180, %s181, %s182
      %p186 = pneg %p180
      %p187 = scmp.eq.s32.totalorder %s19, 1
      %p188 = por %p186, %p187
      %p189 = scmp.ne.s32.totalorder %s181, %s184
      %p190 = scmp.eq.s32.totalorder %s19, 0
      %p191 = por %p189, %p190
      %p192 = scmp.ne.s32.totalorder %s181, %s184
      %p193 = scmp.eq.s32.totalorder %s24, 1
      %p194 = por %p192, %p193
      %p195 = scmp.ne.s32.totalorder %s184, %s185
      %p196 = scmp.eq.s32.totalorder %s24, 0
      %p197 = por %p195, %p196
      %p198 = scmp.ne.s32.totalorder %s184, %s185
      %p199 = scmp.eq.s32.totalorder %s25, 1
      %p200 = por %p198, %p199
      %p202 = scmp.ne.s32.totalorder %s185, %s201
      %p203 = scmp.eq.s32.totalorder %s25, 0
      %p204 = por %p202, %p203
      %p205 = scmp.le.s32.totalorder 1, %s19
      %p206 = scmp.lt.s32.totalorder %s19, 3
      %p207 = pnand %p205, %p206
      %p208 = pneg %p207
      // Predicated region
      $region9: #{tpu_custom_call.1} parent=5 // pred_check
        _
      $region10: #{tpu_custom_call.1} parent=5 // pred_check_branch
        %210 = sbr.rel (%p207) target = $region12
      $region11: #{tpu_custom_call.1} parent=5 // pred_region
        %s211 = ssub.s32 %s19, 1
        // Predicated region
        $region13: #{tpu_custom_call.1} parent=11 // pred_check
          %p212 = pneg %p66
        $region14: #{tpu_custom_call.1} parent=11 // pred_check_branch
          %214 = sbr.rel (%p212) target = $region16
        $region15: #{tpu_custom_call.1} parent=11 // pred_region
          _
        $region16: #{tpu_custom_call.1} parent=11 // pred_fallthru
          _
        // Predicated region
        $region17: #{tpu_custom_call.1} parent=11 // pred_check
          %p215 = pneg %p87
        $region18: #{tpu_custom_call.1} parent=11 // pred_check_branch
          %217 = sbr.rel (%p215) target = $region20
        $region19: #{tpu_custom_call.1} parent=11 // pred_region
          %219 = vsyncadd [#allocation7], 0
          %s220 = sshll.u32 %s2, 4
          %s221 = int_to_ptr.hbm [resolvable:$true] %s220
          %s222 = sshll.u32 [#allocation6], 4
          %s223 = int_to_ptr.vmem [resolvable:$true] %s222
          %228 = dma.hbm_to_vmem [thread:$0]  %s221, 256, %s223, [#allocation7], 64, 64, 4
        $region20: #{tpu_custom_call.1} parent=11 // pred_fallthru
          _
        // Predicated region
        $region21: #{tpu_custom_call.1} parent=11 // pred_check
          %p229 = pneg %p108
        $region22: #{tpu_custom_call.1} parent=11 // pred_check_branch
          %231 = sbr.rel (%p229) target = $region24
        $region23: #{tpu_custom_call.1} parent=11 // pred_region
          %233 = vsyncadd [#allocation7], 0
          %s234 = sshll.u32 %s3, 4
          %s235 = int_to_ptr.hbm [resolvable:$true] %s234
          %s236 = sshll.u32 [#allocation8], 4
          %s237 = int_to_ptr.vmem [resolvable:$true] %s236
          %242 = dma.hbm_to_vmem [thread:$0]  %s235, 256, %s237, [#allocation7], 64, 64, 4
        $region24: #{tpu_custom_call.1} parent=11 // pred_fallthru
          _
        // Predicated region
        $region25: #{tpu_custom_call.1} parent=11 // pred_check
          %p243 = pneg %p129
        $region26: #{tpu_custom_call.1} parent=11 // pred_check_branch
          %245 = sbr.rel (%p243) target = $region28
        $region27: #{tpu_custom_call.1} parent=11 // pred_region
          _
        $region28: #{tpu_custom_call.1} parent=11 // pred_fallthru
          _
        // Predicated region
        $region29: #{tpu_custom_call.1} parent=11 // pred_check
          %p246 = pneg %p150
        $region30: #{tpu_custom_call.1} parent=11 // pred_check_branch
          %248 = sbr.rel (%p246) target = $region32
        $region31: #{tpu_custom_call.1} parent=11 // pred_region
          _
        $region32: #{tpu_custom_call.1} parent=11 // pred_fallthru
          _
        // Predicated region
        $region33: #{tpu_custom_call.1} parent=11 // pred_check
          %p249 = pneg %p171
        $region34: #{tpu_custom_call.1} parent=11 // pred_check_branch
          %251 = sbr.rel (%p249) target = $region36
        $region35: #{tpu_custom_call.1} parent=11 // pred_region
          _
        $region36: #{tpu_custom_call.1} parent=11 // pred_fallthru
          _
      $region12: #{tpu_custom_call.1} parent=5 // pred_fallthru
        _
      %p252 = scmp.lt.s32.totalorder %s19, 2
      // Predicated region
      $region37: #{tpu_custom_call.1} parent=5 // pred_check
        %p253 = pneg %p252
      $region38: #{tpu_custom_call.1} parent=5 // pred_check_branch
        %255 = sbr.rel (%p253) target = $region40
      $region39: #{tpu_custom_call.1} parent=5 // pred_region
        // Predicated region
        $region41: #{tpu_custom_call.1} parent=39 // pred_check
          %p256 = pneg %p39
        $region42: #{tpu_custom_call.1} parent=39 // pred_check_branch
          %258 = sbr.rel (%p256) target = $region44
        $region43: #{tpu_custom_call.1} parent=39 // pred_region
          %s259 = sand.u32 %s29, 1
          %s260 = scalar_lea.sflag [#allocation5], %s259
          %s261 = sand.u32 %s29, 1
          %s262 = smul.addr %s261, 40
          %s263 = scalar_lea.vmem [#allocation4], %s262
          %265 = vsyncadd %s260, 0
          %s266 = smul.addr %s19, 8
          %s267 = scalar_lea.hbm %s0, %s266
          %s268 = sshll.u32 %s267, 4
          %s269 = int_to_ptr.hbm [resolvable:$true] %s268
          %s270 = sshll.u32 %s263, 4
          %s271 = int_to_ptr.vmem [resolvable:$true] %s270
          %276 = dma.hbm_to_vmem [thread:$0]  %s269, 640, %s271, %s260, 256, 128, 8
        $region44: #{tpu_custom_call.1} parent=39 // pred_fallthru
          _
      $region40: #{tpu_custom_call.1} parent=5 // pred_fallthru
        _
      %p277 = scmp.le.s32.totalorder 1, %s19
      %p278 = scmp.lt.s32.totalorder %s19, 3
      %p279 = pnand %p277, %p278
      %p280 = pneg %p279
      // Predicated region
      $region45: #{tpu_custom_call.1} parent=5 // pred_check
        _
      $region46: #{tpu_custom_call.1} parent=5 // pred_check_branch
        %282 = sbr.rel (%p279) target = $region48
      $region47: #{tpu_custom_call.1} parent=5 // pred_region
        %s283 = ssub.s32 %s19, 1
        %s284 = sand.u32 %s32, 1
        %s285 = scalar_lea.sflag [#allocation5], %s284
        %s286 = sand.u32 %s32, 1
        %s287 = smul.addr %s286, 40
        %s288 = scalar_lea.vmem [#allocation4], %s287
        // Predicated region
        $region49: #{tpu_custom_call.1} parent=47 // pred_check
          %p289 = pneg %p45
        $region50: #{tpu_custom_call.1} parent=47 // pred_check_branch
          %291 = sbr.rel (%p289) target = $region52
        $region51: #{tpu_custom_call.1} parent=47 // pred_region
          %293 = dma.done %s285, 640
        $region52: #{tpu_custom_call.1} parent=47 // pred_fallthru
          _
        // Predicated region
        $region53: #{tpu_custom_call.1} parent=47 // pred_check
          %p294 = pneg %p87
        $region54: #{tpu_custom_call.1} parent=47 // pred_check_branch
          %296 = sbr.rel (%p294) target = $region56
        $region55: #{tpu_custom_call.1} parent=47 // pred_region
          %298 = dma.done [#allocation7], 256
        $region56: #{tpu_custom_call.1} parent=47 // pred_fallthru
          _
        // Predicated region
        $region57: #{tpu_custom_call.1} parent=47 // pred_check
          %p299 = pneg %p108
        $region58: #{tpu_custom_call.1} parent=47 // pred_check_branch
          %301 = sbr.rel (%p299) target = $region60
        $region59: #{tpu_custom_call.1} parent=47 // pred_region
          %303 = dma.done [#allocation7], 256
        $region60: #{tpu_custom_call.1} parent=47 // pred_fallthru
          _
        %s304 = sand.u32 %s32, 1
        %s305 = scalar_lea.sflag [#allocation5], %s304
        %s306 = sand.u32 %s32, 1
        %s307 = smul.addr %s306, 40
        %s308 = scalar_lea.vmem [#allocation4], %s307
        %p309 = pneg %p45
        %p310 = pneg %p42
        %p311 = pneg %p66
        %p312 = pneg %p63
        %p313 = pneg %p87
        %p314 = pneg %p84
        %p315 = pneg %p108
        %p316 = pneg %p105
        %p317 = pneg %p129
        %p318 = pneg %p126
        %p319 = pneg %p150
        %p320 = pneg %p147
        %p321 = pneg %p171
        %p322 = pneg %p168
        %p323 = pneg %p197
        %p324 = pneg %p194
        %p325 = scmp.lt.s32.totalorder %s24, 1
        %s326 = scalar_select %p325, %s24, 1
        %s327 = smul.addr %s326, 8
        %s328 = scalar_lea.vmem %s7, %s327
        %p329 = scmp.lt.s32.totalorder %s24, 1
        %s330 = scalar_select %p329, %s24, 1
        %s331 = smul.addr %s330, 8
        %s332 = scalar_lea.vmem %s7, %s331
        %v334 = vld [vmem:[%s1] sm:$0xf]
        %v335 = vld [vmem:[%s1 + $0x4] sm:$0xf]
        %v336 = vld [vmem:[%s1 + $0x8] sm:$0xf]
        %v337 = vld [vmem:[%s1 + $0xc] sm:$0xf]
        %v338 = vld [vmem:[#allocation8] sm:$0xf]
        %v339 = vld [vmem:[#allocation8 + $0x4] sm:$0xf]
        %v340 = vld [vmem:[#allocation8 + $0x8] sm:$0xf]
        %v341 = vld [vmem:[#allocation8 + $0xc] sm:$0xf]
        %v342 = vld [vmem:[%s4] sm:$0x1]
        %v343 = vld [vmem:[%s288] sm:$0xff]
        %v348 = vunpack.c.l.b16 %v334
        %v349 = vunpack.c.l.b16 %v335
        %v350 = vunpack.c.l.b16 %v336
        %v351 = vunpack.c.l.b16 %v337
        %v352 = vpack.c.b16 %v349, %v348
        %v353 = vpack.c.b16 %v351, %v350
        %vm356 = vcmask 261120
        %v358 = vsel %vm356, 0, 0
        %360 = vmatpush.bf16.msra.mxu0 0
        %361 = vmatpush.bf16.msra.mxu0 0
        %362 = vmatpush.bf16.msra.mxu0 0
        %363 = vmatpush.bf16.msra.mxu0 0
        %364 = vmatpush.bf16.msra.mxu0 0
        %365 = vmatpush.bf16.msra.mxu0 0
        %366 = vmatpush.bf16.msra.mxu0 %v353
        %367 = vmatpush.bf16.msra.mxu0 %v352
        %368 = vmatmul.bf16.gmra.mxu0 %v358
        %v369 = vpop.f32.mrf.mxu0
        %v370 = vadd.f32 0.0, %v369
        %v371 = vpop.f32.mrf.mxu0
        %372 = vdwg.mxu0
        %v373 = vadd.f32 %v343, %v370
        %v374 = vxor.u32 %v373, 2147483648
        %v375 = vmul.f32 %v374, 1.442695
        %v376 = vpow.pop %v375
        %v377 = vadd.f32 %v376, 1.0
        %v378 = vrcp.pop %v377
        %v379 = vmul.f32 %v377, %v378
        %v380 = vsub.f32 1.0, %v379
        %v381 = vmul.f32 %v378, %v380
        %v382 = vadd.f32 %v378, %v381
        %vm383 = vweird.f32 %v377
        %vm384 = vweird.f32 %v378
        %vm385 = vmor %vm383, %vm384
        %v386 = vsel %vm385, %v378, %v382
        %v387 = vand.u32 2147483647, %v377
        %vm388 = vcmp.eq.f32.partialorder %v387, 8.507059e+37
        %v389 = vand.u32 %v377, 2147483648
        %v390 = vor.u32 1.1754944e-38, %v389
        %v391 = vsel %vm388, %v390, %v386
        %v392 = vmul.f32 1.0, %v391
        %v393 = vtanh.pop %v373
        %v394 = vmul.f32 %v392, 0.0
        %396 = vrot.lane.b32.xlu0 %v393, 64
        %v397 = vpop.permute.xlu0 %396
        %v399 = vmul.f32 %v392, %v397
        %401 = vrot.lane.b32.xlu0 %v399, 32
        %v402 = vpop.permute.xlu0 %401
        %v404 = vadd.f32 %v394, %v402
        %v405 = vtanh.pop %v404
        %407 = vrot.lane.b32.xlu0 %v405, 64
        %v408 = vpop.permute.xlu0 %407
        %v410 = vmul.f32 %v392, %v408
        %v411 = vpack.c.bf16 %v410, %v410
        %v413 = vperm.slane %v342, 0
        %416 = vrot.lane.b32.xlu0 %v411, 32
        %v417 = vpop.permute.xlu0 %416
        %v422 = vunpack.c.l.b16 %v338
        %v423 = vunpack.c.l.b16 %v339
        %v424 = vunpack.c.l.b16 %v340
        %v425 = vunpack.c.l.b16 %v341
        %v426 = vpack.c.b16 %v423, %v422
        %v427 = vpack.c.b16 %v425, %v424
        %v431 = vsel %vm356, %v417, 0
        %433 = vmatpush.bf16.msra.mxu0 0
        %434 = vmatpush.bf16.msra.mxu0 0
        %435 = vmatpush.bf16.msra.mxu0 0
        %436 = vmatpush.bf16.msra.mxu0 0
        %437 = vmatpush.bf16.msra.mxu0 0
        %438 = vmatpush.bf16.msra.mxu0 0
        %439 = vmatpush.bf16.msra.mxu0 %v427
        %440 = vmatpush.bf16.msra.mxu0 %v426
        %441 = vmatmul.bf16.gmra.mxu0 %v431
        %v442 = vpop.f32.mrf.mxu0
        %v443 = vadd.f32 %v413, %v442
        %v444 = vpop.f32.mrf.mxu0
        %445 = vdwg.mxu0
        %446 = vst [vmem:[#allocation2] sm:$0xff] %v443
        %s447 = scalar_lea.vmem %s288, 8 [#allocation4]
        %v448 = vld [vmem:[%s447] sm:$0xff]
        %449 = vmatpush.bf16.msra.mxu0 0
        %450 = vmatpush.bf16.msra.mxu0 0
        %451 = vmatpush.bf16.msra.mxu0 0
        %452 = vmatpush.bf16.msra.mxu0 0
        %453 = vmatpush.bf16.msra.mxu0 0
        %454 = vmatpush.bf16.msra.mxu0 0
        %455 = vmatpush.bf16.msra.mxu0 %v353
        %456 = vmatpush.bf16.msra.mxu0 %v352
        %457 = vmatmul.bf16.gmra.mxu0 %v431
        %v458 = vpop.f32.mrf.mxu0
        %v459 = vadd.f32 0.0, %v458
        %v460 = vpop.f32.mrf.mxu0
        %461 = vdwg.mxu0
        %v462 = vadd.f32 %v448, %v459
        %v463 = vxor.u32 %v462, 2147483648
        %v464 = vmul.f32 %v463, 1.442695
        %v465 = vpow.pop %v464
        %v466 = vadd.f32 %v465, 1.0
        %v467 = vrcp.pop %v466
        %v468 = vmul.f32 %v466, %v467
        %v469 = vsub.f32 1.0, %v468
        %v470 = vmul.f32 %v467, %v469
        %v471 = vadd.f32 %v467, %v470
        %vm472 = vweird.f32 %v466
        %vm473 = vweird.f32 %v467
        %vm474 = vmor %vm472, %vm473
        %v475 = vsel %vm474, %v467, %v471
        %v476 = vand.u32 2147483647, %v466
        %vm477 = vcmp.eq.f32.partialorder %v476, 8.507059e+37
        %v478 = vand.u32 %v466, 2147483648
        %v479 = vor.u32 1.1754944e-38, %v478
        %v480 = vsel %vm477, %v479, %v475
        %v481 = vmul.f32 1.0, %v480
        %v482 = vtanh.pop %v462
        %v483 = vmul.f32 %v481, %v404
        %485 = vrot.lane.b32.xlu0 %v482, 64
        %v486 = vpop.permute.xlu0 %485
        %v488 = vmul.f32 %v481, %v486
        %490 = vrot.lane.b32.xlu0 %v488, 32
        %v491 = vpop.permute.xlu0 %490
        %v493 = vadd.f32 %v483, %v491
        %v494 = vtanh.pop %v493
        %496 = vrot.lane.b32.xlu0 %v494, 64
        %v497 = vpop.permute.xlu0 %496
        %v499 = vmul.f32 %v481, %v497
        %v500 = vpack.c.bf16 %v499, %v499
        %502 = vrot.lane.b32.xlu0 %v500, 32
        %v503 = vpop.permute.xlu0 %502
        %v505 = vsel %vm356, %v503, 0
        %507 = vmatpush.bf16.msra.mxu0 0
        %508 = vmatpush.bf16.msra.mxu0 0
        %509 = vmatpush.bf16.msra.mxu0 0
        %510 = vmatpush.bf16.msra.mxu0 0
        %511 = vmatpush.bf16.msra.mxu0 0
        %512 = vmatpush.bf16.msra.mxu0 0
        %513 = vmatpush.bf16.msra.mxu0 %v427
        %514 = vmatpush.bf16.msra.mxu0 %v426
        %515 = vmatmul.bf16.gmra.mxu0 %v505
        %v516 = vpop.f32.mrf.mxu0
        %v517 = vadd.f32 %v413, %v516
        %v518 = vpop.f32.mrf.mxu0
        %519 = vdwg.mxu0
        %s520 = scalar_lea.vmem [#allocation2], 8
        %521 = vst [vmem:[%s520] sm:$0xff] %v517
        %s522 = scalar_lea.vmem %s288, 16 [#allocation4]
        %v523 = vld [vmem:[%s522] sm:$0xff]
        %524 = vmatpush.bf16.msra.mxu0 0
        %525 = vmatpush.bf16.msra.mxu0 0
        %526 = vmatpush.bf16.msra.mxu0 0
        %527 = vmatpush.bf16.msra.mxu0 0
        %528 = vmatpush.bf16.msra.mxu0 0
        %529 = vmatpush.bf16.msra.mxu0 0
        %530 = vmatpush.bf16.msra.mxu0 %v353
        %531 = vmatpush.bf16.msra.mxu0 %v352
        %532 = vmatmul.bf16.gmra.mxu0 %v505
        %v533 = vpop.f32.mrf.mxu0
        %v534 = vadd.f32 0.0, %v533
        %v535 = vpop.f32.mrf.mxu0
        %536 = vdwg.mxu0
        %v537 = vadd.f32 %v523, %v534
        %v538 = vxor.u32 %v537, 2147483648
        %v539 = vmul.f32 %v538, 1.442695
        %v540 = vpow.pop %v539
        %v541 = vadd.f32 %v540, 1.0
        %v542 = vrcp.pop %v541
        %v543 = vmul.f32 %v541, %v542
        %v544 = vsub.f32 1.0, %v543
        %v545 = vmul.f32 %v542, %v544
        %v546 = vadd.f32 %v542, %v545
        %vm547 = vweird.f32 %v541
        %vm548 = vweird.f32 %v542
        %vm549 = vmor %vm547, %vm548
        %v550 = vsel %vm549, %v542, %v546
        %v551 = vand.u32 2147483647, %v541
        %vm552 = vcmp.eq.f32.partialorder %v551, 8.507059e+37
        %v553 = vand.u32 %v541, 2147483648
        %v554 = vor.u32 1.1754944e-38, %v553
        %v555 = vsel %vm552, %v554, %v550
        %v556 = vmul.f32 1.0, %v555
        %v557 = vtanh.pop %v537
        %v558 = vmul.f32 %v556, %v493
        %560 = vrot.lane.b32.xlu0 %v557, 64
        %v561 = vpop.permute.xlu0 %560
        %v563 = vmul.f32 %v556, %v561
        %565 = vrot.lane.b32.xlu0 %v563, 32
        %v566 = vpop.permute.xlu0 %565
        %v568 = vadd.f32 %v558, %v566
        %v569 = vtanh.pop %v568
        %571 = vrot.lane.b32.xlu0 %v569, 64
        %v572 = vpop.permute.xlu0 %571
        %v574 = vmul.f32 %v556, %v572
        %v575 = vpack.c.bf16 %v574, %v574
        %577 = vrot.lane.b32.xlu0 %v575, 32
        %v578 = vpop.permute.xlu0 %577
        %v580 = vsel %vm356, %v578, 0
        %582 = vmatpush.bf16.msra.mxu0 0
        %583 = vmatpush.bf16.msra.mxu0 0
        %584 = vmatpush.bf16.msra.mxu0 0
        %585 = vmatpush.bf16.msra.mxu0 0
        %586 = vmatpush.bf16.msra.mxu0 0
        %587 = vmatpush.bf16.msra.mxu0 0
        %588 = vmatpush.bf16.msra.mxu0 %v427
        %589 = vmatpush.bf16.msra.mxu0 %v426
        %590 = vmatmul.bf16.gmra.mxu0 %v580
        %v591 = vpop.f32.mrf.mxu0
        %v592 = vadd.f32 %v413, %v591
        %v593 = vpop.f32.mrf.mxu0
        %594 = vdwg.mxu0
        %s595 = scalar_lea.vmem [#allocation2], 16
        %596 = vst [vmem:[%s595] sm:$0xff] %v592
        %s597 = scalar_lea.vmem %s288, 24 [#allocation4]
        %v598 = vld [vmem:[%s597] sm:$0xff]
        %599 = vmatpush.bf16.msra.mxu0 0
        %600 = vmatpush.bf16.msra.mxu0 0
        %601 = vmatpush.bf16.msra.mxu0 0
        %602 = vmatpush.bf16.msra.mxu0 0
        %603 = vmatpush.bf16.msra.mxu0 0
        %604 = vmatpush.bf16.msra.mxu0 0
        %605 = vmatpush.bf16.msra.mxu0 %v353
        %606 = vmatpush.bf16.msra.mxu0 %v352
        %607 = vmatmul.bf16.gmra.mxu0 %v580
        %v608 = vpop.f32.mrf.mxu0
        %v609 = vadd.f32 0.0, %v608
        %v610 = vpop.f32.mrf.mxu0
        %611 = vdwg.mxu0
        %v612 = vadd.f32 %v598, %v609
        %v613 = vxor.u32 %v612, 2147483648
        %v614 = vmul.f32 %v613, 1.442695
        %v615 = vpow.pop %v614
        %v616 = vadd.f32 %v615, 1.0
        %v617 = vrcp.pop %v616
        %v618 = vmul.f32 %v616, %v617
        %v619 = vsub.f32 1.0, %v618
        %v620 = vmul.f32 %v617, %v619
        %v621 = vadd.f32 %v617, %v620
        %vm622 = vweird.f32 %v616
        %vm623 = vweird.f32 %v617
        %vm624 = vmor %vm622, %vm623
        %v625 = vsel %vm624, %v617, %v621
        %v626 = vand.u32 2147483647, %v616
        %vm627 = vcmp.eq.f32.partialorder %v626, 8.507059e+37
        %v628 = vand.u32 %v616, 2147483648
        %v629 = vor.u32 1.1754944e-38, %v628
        %v630 = vsel %vm627, %v629, %v625
        %v631 = vmul.f32 1.0, %v630
        %v632 = vtanh.pop %v612
        %v633 = vmul.f32 %v631, %v568
        %635 = vrot.lane.b32.xlu0 %v632, 64
        %v636 = vpop.permute.xlu0 %635
        %v638 = vmul.f32 %v631, %v636
        %640 = vrot.lane.b32.xlu0 %v638, 32
        %v641 = vpop.permute.xlu0 %640
        %v643 = vadd.f32 %v633, %v641
        %v644 = vtanh.pop %v643
        %646 = vrot.lane.b32.xlu0 %v644, 64
        %v647 = vpop.permute.xlu0 %646
        %v649 = vmul.f32 %v631, %v647
        %v650 = vpack.c.bf16 %v649, %v649
        %652 = vrot.lane.b32.xlu0 %v650, 32
        %v653 = vpop.permute.xlu0 %652
        %v655 = vsel %vm356, %v653, 0
        %657 = vmatpush.bf16.msra.mxu0 0
        %658 = vmatpush.bf16.msra.mxu0 0
        %659 = vmatpush.bf16.msra.mxu0 0
        %660 = vmatpush.bf16.msra.mxu0 0
        %661 = vmatpush.bf16.msra.mxu0 0
        %662 = vmatpush.bf16.msra.mxu0 0
        %663 = vmatpush.bf16.msra.mxu0 %v427
        %664 = vmatpush.bf16.msra.mxu0 %v426
        %665 = vmatmul.bf16.gmra.mxu0 %v655
        %v666 = vpop.f32.mrf.mxu0
        %v667 = vadd.f32 %v413, %v666
        %v668 = vpop.f32.mrf.mxu0
        %669 = vdwg.mxu0
        %s670 = scalar_lea.vmem [#allocation2], 24
        %671 = vst [vmem:[%s670] sm:$0xff] %v667
        %s672 = scalar_lea.vmem %s288, 32 [#allocation4]
        %v673 = vld [vmem:[%s672] sm:$0xff]
        %674 = vmatpush.bf16.msra.mxu0 0
        %675 = vmatpush.bf16.msra.mxu0 0
        %676 = vmatpush.bf16.msra.mxu0 0
        %677 = vmatpush.bf16.msra.mxu0 0
        %678 = vmatpush.bf16.msra.mxu0 0
        %679 = vmatpush.bf16.msra.mxu0 0
        %680 = vmatpush.bf16.msra.mxu0 %v353
        %681 = vmatpush.bf16.msra.mxu0 %v352
        %682 = vmatmul.bf16.gmra.mxu0 %v655
        %v683 = vpop.f32.mrf.mxu0
        %v684 = vadd.f32 0.0, %v683
        %v685 = vpop.f32.mrf.mxu0
        %686 = vdwg.mxu0
        %v687 = vadd.f32 %v673, %v684
        %v688 = vxor.u32 %v687, 2147483648
        %v689 = vmul.f32 %v688, 1.442695
        %v690 = vpow.pop %v689
        %v691 = vadd.f32 %v690, 1.0
        %v692 = vrcp.pop %v691
        %v693 = vmul.f32 %v691, %v692
        %v694 = vsub.f32 1.0, %v693
        %v695 = vmul.f32 %v692, %v694
        %v696 = vadd.f32 %v692, %v695
        %vm697 = vweird.f32 %v691
        %vm698 = vweird.f32 %v692
        %vm699 = vmor %vm697, %vm698
        %v700 = vsel %vm699, %v692, %v696
        %v701 = vand.u32 2147483647, %v691
        %vm702 = vcmp.eq.f32.partialorder %v701, 8.507059e+37
        %v703 = vand.u32 %v691, 2147483648
        %v704 = vor.u32 1.1754944e-38, %v703
        %v705 = vsel %vm702, %v704, %v700
        %v706 = vmul.f32 1.0, %v705
        %v707 = vtanh.pop %v687
        %v708 = vmul.f32 %v706, %v643
        %710 = vrot.lane.b32.xlu0 %v707, 64
        %v711 = vpop.permute.xlu0 %710
        %v713 = vmul.f32 %v706, %v711
        %715 = vrot.lane.b32.xlu0 %v713, 32
        %v716 = vpop.permute.xlu0 %715
        %v718 = vadd.f32 %v708, %v716
        %v719 = vtanh.pop %v718
        %721 = vrot.lane.b32.xlu0 %v719, 64
        %v722 = vpop.permute.xlu0 %721
        %v724 = vmul.f32 %v706, %v722
        %v725 = vpack.c.bf16 %v724, %v724
        %727 = vrot.lane.b32.xlu0 %v725, 32
        %v728 = vpop.permute.xlu0 %727
        %v730 = vsel %vm356, %v728, 0
        %732 = vmatpush.bf16.msra.mxu0 0
        %733 = vmatpush.bf16.msra.mxu0 0
        %734 = vmatpush.bf16.msra.mxu0 0
        %735 = vmatpush.bf16.msra.mxu0 0
        %736 = vmatpush.bf16.msra.mxu0 0
        %737 = vmatpush.bf16.msra.mxu0 0
        %738 = vmatpush.bf16.msra.mxu0 %v427
        %739 = vmatpush.bf16.msra.mxu0 %v426
        %740 = vmatmul.bf16.gmra.mxu0 %v730
        %v741 = vpop.f32.mrf.mxu0
        %v742 = vadd.f32 %v413, %v741
        %v743 = vpop.f32.mrf.mxu0
        %744 = vdwg.mxu0
        %s745 = scalar_lea.vmem [#allocation2], 32
        %746 = vst [vmem:[%s745] sm:$0xff] %v742
        %v747 = vld [vmem:[#allocation6] sm:$0xf]
        %v748 = vld [vmem:[#allocation6 + $0x4] sm:$0xf]
        %v749 = vld [vmem:[#allocation6 + $0x8] sm:$0xf]
        %v750 = vld [vmem:[#allocation6 + $0xc] sm:$0xf]
        %v751 = vld [vmem:[%s5] sm:$0xf]
        %v752 = vld [vmem:[%s5 + $0x4] sm:$0xf]
        %v753 = vld [vmem:[%s5 + $0x8] sm:$0xf]
        %v754 = vld [vmem:[%s5 + $0xc] sm:$0xf]
        %v755 = vld [vmem:[#allocation2] sm:$0xff]
        %v760 = vunpack.c.l.b16 %v747
        %v761 = vunpack.c.l.b16 %v748
        %v762 = vunpack.c.l.b16 %v749
        %v763 = vunpack.c.l.b16 %v750
        %v764 = vpack.c.b16 %v761, %v760
        %v765 = vpack.c.b16 %v763, %v762
        %768 = vmatpush.bf16.msra.mxu0 0
        %769 = vmatpush.bf16.msra.mxu0 0
        %770 = vmatpush.bf16.msra.mxu0 0
        %771 = vmatpush.bf16.msra.mxu0 0
        %772 = vmatpush.bf16.msra.mxu0 0
        %773 = vmatpush.bf16.msra.mxu0 0
        %774 = vmatpush.bf16.msra.mxu0 %v765
        %775 = vmatpush.bf16.msra.mxu0 %v764
        %776 = vmatmul.bf16.gmra.mxu0 %v358
        %v777 = vpop.f32.mrf.mxu0
        %v778 = vadd.f32 0.0, %v777
        %v779 = vpop.f32.mrf.mxu0
        %780 = vdwg.mxu0
        %v781 = vadd.f32 %v755, %v778
        %v782 = vxor.u32 %v781, 2147483648
        %v783 = vmul.f32 %v782, 1.442695
        %v784 = vpow.pop %v783
        %v785 = vadd.f32 %v784, 1.0
        %v786 = vrcp.pop %v785
        %v787 = vmul.f32 %v785, %v786
        %v788 = vsub.f32 1.0, %v787
        %v789 = vmul.f32 %v786, %v788
        %v790 = vadd.f32 %v786, %v789
        %vm791 = vweird.f32 %v785
        %vm792 = vweird.f32 %v786
        %vm793 = vmor %vm791, %vm792
        %v794 = vsel %vm793, %v786, %v790
        %v795 = vand.u32 2147483647, %v785
        %vm796 = vcmp.eq.f32.partialorder %v795, 8.507059e+37
        %v797 = vand.u32 %v785, 2147483648
        %v798 = vor.u32 1.1754944e-38, %v797
        %v799 = vsel %vm796, %v798, %v794
        %v800 = vmul.f32 1.0, %v799
        %v801 = vtanh.pop %v781
        %v802 = vmul.f32 %v800, 0.0
        %804 = vrot.lane.b32.xlu0 %v801, 64
        %v805 = vpop.permute.xlu0 %804
        %v807 = vmul.f32 %v800, %v805
        %809 = vrot.lane.b32.xlu0 %v807, 32
        %v810 = vpop.permute.xlu0 %809
        %v812 = vadd.f32 %v802, %v810
        %v813 = vtanh.pop %v812
        %815 = vrot.lane.b32.xlu0 %v813, 64
        %v816 = vpop.permute.xlu0 %815
        %v818 = vmul.f32 %v800, %v816
        %v819 = vpack.c.bf16 %v818, %v818
        %821 = vrot.lane.b32.xlu0 %v819, 32
        %v822 = vpop.permute.xlu0 %821
        %v827 = vunpack.c.l.b16 %v751
        %v828 = vunpack.c.l.b16 %v752
        %v829 = vunpack.c.l.b16 %v753
        %v830 = vunpack.c.l.b16 %v754
        %v831 = vpack.c.b16 %v828, %v827
        %v832 = vpack.c.b16 %v830, %v829
        %v836 = vsel %vm356, %v822, 0
        %838 = vmatpush.bf16.msra.mxu0 0
        %839 = vmatpush.bf16.msra.mxu0 0
        %840 = vmatpush.bf16.msra.mxu0 0
        %841 = vmatpush.bf16.msra.mxu0 0
        %842 = vmatpush.bf16.msra.mxu0 0
        %843 = vmatpush.bf16.msra.mxu0 0
        %844 = vmatpush.bf16.msra.mxu0 %v832
        %845 = vmatpush.bf16.msra.mxu0 %v831
        %846 = vmatmul.bf16.gmra.mxu0 %v836
        %v847 = vpop.f32.mrf.mxu0
        %v848 = vadd.f32 0.0, %v847
        %v849 = vpop.f32.mrf.mxu0
        %850 = vdwg.mxu0
        %v851 = vld [vmem:[%s520] sm:$0xff]
        %852 = vmatpush.bf16.msra.mxu0 0
        %853 = vmatpush.bf16.msra.mxu0 0
        %854 = vmatpush.bf16.msra.mxu0 0
        %855 = vmatpush.bf16.msra.mxu0 0
        %856 = vmatpush.bf16.msra.mxu0 0
        %857 = vmatpush.bf16.msra.mxu0 0
        %858 = vmatpush.bf16.msra.mxu0 %v765
        %859 = vmatpush.bf16.msra.mxu0 %v764
        %860 = vmatmul.bf16.gmra.mxu0 %v836
        %v861 = vpop.f32.mrf.mxu0
        %v862 = vadd.f32 0.0, %v861
        %v863 = vpop.f32.mrf.mxu0
        %864 = vdwg.mxu0
        %v865 = vadd.f32 %v851, %v862
        %v866 = vxor.u32 %v865, 2147483648
        %v867 = vmul.f32 %v866, 1.442695
        %v868 = vpow.pop %v867
        %v869 = vadd.f32 %v868, 1.0
        %v870 = vrcp.pop %v869
        %v871 = vmul.f32 %v869, %v870
        %v872 = vsub.f32 1.0, %v871
        %v873 = vmul.f32 %v870, %v872
        %v874 = vadd.f32 %v870, %v873
        %vm875 = vweird.f32 %v869
        %vm876 = vweird.f32 %v870
        %vm877 = vmor %vm875, %vm876
        %v878 = vsel %vm877, %v870, %v874
        %v879 = vand.u32 2147483647, %v869
        %vm880 = vcmp.eq.f32.partialorder %v879, 8.507059e+37
        %v881 = vand.u32 %v869, 2147483648
        %v882 = vor.u32 1.1754944e-38, %v881
        %v883 = vsel %vm880, %v882, %v878
        %v884 = vmul.f32 1.0, %v883
        %v885 = vtanh.pop %v865
        %v886 = vmul.f32 %v884, %v812
        %888 = vrot.lane.b32.xlu0 %v885, 64
        %v889 = vpop.permute.xlu0 %888
        %v891 = vmul.f32 %v884, %v889
        %893 = vrot.lane.b32.xlu0 %v891, 32
        %v894 = vpop.permute.xlu0 %893
        %v896 = vadd.f32 %v886, %v894
        %v897 = vtanh.pop %v896
        %899 = vrot.lane.b32.xlu0 %v897, 64
        %v900 = vpop.permute.xlu0 %899
        %v902 = vmul.f32 %v884, %v900
        %v903 = vpack.c.bf16 %v902, %v902
        %905 = vrot.lane.b32.xlu0 %v903, 32
        %v906 = vpop.permute.xlu0 %905
        %v908 = vsel %vm356, %v906, 0
        %910 = vmatpush.bf16.msra.mxu0 0
        %911 = vmatpush.bf16.msra.mxu0 0
        %912 = vmatpush.bf16.msra.mxu0 0
        %913 = vmatpush.bf16.msra.mxu0 0
        %914 = vmatpush.bf16.msra.mxu0 0
        %915 = vmatpush.bf16.msra.mxu0 0
        %916 = vmatpush.bf16.msra.mxu0 %v832
        %917 = vmatpush.bf16.msra.mxu0 %v831
        %918 = vmatmul.bf16.gmra.mxu0 %v908
        %v919 = vpop.f32.mrf.mxu0
        %v920 = vadd.f32 0.0, %v919
        %v921 = vpop.f32.mrf.mxu0
        %922 = vdwg.mxu0
        %v923 = vld [vmem:[%s595] sm:$0xff]
        %924 = vmatpush.bf16.msra.mxu0 0
        %925 = vmatpush.bf16.msra.mxu0 0
        %926 = vmatpush.bf16.msra.mxu0 0
        %927 = vmatpush.bf16.msra.mxu0 0
        %928 = vmatpush.bf16.msra.mxu0 0
        %929 = vmatpush.bf16.msra.mxu0 0
        %930 = vmatpush.bf16.msra.mxu0 %v765
        %931 = vmatpush.bf16.msra.mxu0 %v764
        %932 = vmatmul.bf16.gmra.mxu0 %v908
        %v933 = vpop.f32.mrf.mxu0
        %v934 = vadd.f32 0.0, %v933
        %v935 = vpop.f32.mrf.mxu0
        %936 = vdwg.mxu0
        %v937 = vadd.f32 %v923, %v934
        %v938 = vxor.u32 %v937, 2147483648
        %v939 = vmul.f32 %v938, 1.442695
        %v940 = vpow.pop %v939
        %v941 = vadd.f32 %v940, 1.0
        %v942 = vrcp.pop %v941
        %v943 = vmul.f32 %v941, %v942
        %v944 = vsub.f32 1.0, %v943
        %v945 = vmul.f32 %v942, %v944
        %v946 = vadd.f32 %v942, %v945
        %vm947 = vweird.f32 %v941
        %vm948 = vweird.f32 %v942
        %vm949 = vmor %vm947, %vm948
        %v950 = vsel %vm949, %v942, %v946
        %v951 = vand.u32 2147483647, %v941
        %vm952 = vcmp.eq.f32.partialorder %v951, 8.507059e+37
        %v953 = vand.u32 %v941, 2147483648
        %v954 = vor.u32 1.1754944e-38, %v953
        %v955 = vsel %vm952, %v954, %v950
        %v956 = vmul.f32 1.0, %v955
        %v957 = vtanh.pop %v937
        %v958 = vmul.f32 %v956, %v896
        %960 = vrot.lane.b32.xlu0 %v957, 64
        %v961 = vpop.permute.xlu0 %960
        %v963 = vmul.f32 %v956, %v961
        %965 = vrot.lane.b32.xlu0 %v963, 32
        %v966 = vpop.permute.xlu0 %965
        %v968 = vadd.f32 %v958, %v966
        %v969 = vtanh.pop %v968
        %971 = vrot.lane.b32.xlu0 %v969, 64
        %v972 = vpop.permute.xlu0 %971
        %v974 = vmul.f32 %v956, %v972
        %v975 = vpack.c.bf16 %v974, %v974
        %977 = vrot.lane.b32.xlu0 %v975, 32
        %v978 = vpop.permute.xlu0 %977
        %v980 = vsel %vm356, %v978, 0
        %982 = vmatpush.bf16.msra.mxu0 0
        %983 = vmatpush.bf16.msra.mxu0 0
        %984 = vmatpush.bf16.msra.mxu0 0
        %985 = vmatpush.bf16.msra.mxu0 0
        %986 = vmatpush.bf16.msra.mxu0 0
        %987 = vmatpush.bf16.msra.mxu0 0
        %988 = vmatpush.bf16.msra.mxu0 %v832
        %989 = vmatpush.bf16.msra.mxu0 %v831
        %990 = vmatmul.bf16.gmra.mxu0 %v980
        %v991 = vpop.f32.mrf.mxu0
        %v992 = vadd.f32 0.0, %v991
        %v993 = vpop.f32.mrf.mxu0
        %994 = vdwg.mxu0
        %v995 = vld [vmem:[%s670] sm:$0xff]
        %996 = vmatpush.bf16.msra.mxu0 0
        %997 = vmatpush.bf16.msra.mxu0 0
        %998 = vmatpush.bf16.msra.mxu0 0
        %999 = vmatpush.bf16.msra.mxu0 0
        %1000 = vmatpush.bf16.msra.mxu0 0
        %1001 = vmatpush.bf16.msra.mxu0 0
        %1002 = vmatpush.bf16.msra.mxu0 %v765
        %1003 = vmatpush.bf16.msra.mxu0 %v764
        %1004 = vmatmul.bf16.gmra.mxu0 %v980
        %v1005 = vpop.f32.mrf.mxu0
        %v1006 = vadd.f32 0.0, %v1005
        %v1007 = vpop.f32.mrf.mxu0
        %1008 = vdwg.mxu0
        %v1009 = vadd.f32 %v995, %v1006
        %v1010 = vxor.u32 %v1009, 2147483648
        %v1011 = vmul.f32 %v1010, 1.442695
        %v1012 = vpow.pop %v1011
        %v1013 = vadd.f32 %v1012, 1.0
        %v1014 = vrcp.pop %v1013
        %v1015 = vmul.f32 %v1013, %v1014
        %v1016 = vsub.f32 1.0, %v1015
        %v1017 = vmul.f32 %v1014, %v1016
        %v1018 = vadd.f32 %v1014, %v1017
        %vm1019 = vweird.f32 %v1013
        %vm1020 = vweird.f32 %v1014
        %vm1021 = vmor %vm1019, %vm1020
        %v1022 = vsel %vm1021, %v1014, %v1018
        %v1023 = vand.u32 2147483647, %v1013
        %vm1024 = vcmp.eq.f32.partialorder %v1023, 8.507059e+37
        %v1025 = vand.u32 %v1013, 2147483648
        %v1026 = vor.u32 1.1754944e-38, %v1025
        %v1027 = vsel %vm1024, %v1026, %v1022
        %v1028 = vmul.f32 1.0, %v1027
        %v1029 = vtanh.pop %v1009
        %v1030 = vmul.f32 %v1028, %v968
        %1032 = vrot.lane.b32.xlu0 %v1029, 64
        %v1033 = vpop.permute.xlu0 %1032
        %v1035 = vmul.f32 %v1028, %v1033
        %1037 = vrot.lane.b32.xlu0 %v1035, 32
        %v1038 = vpop.permute.xlu0 %1037
        %v1040 = vadd.f32 %v1030, %v1038
        %v1041 = vtanh.pop %v1040
        %1043 = vrot.lane.b32.xlu0 %v1041, 64
        %v1044 = vpop.permute.xlu0 %1043
        %v1046 = vmul.f32 %v1028, %v1044
        %v1047 = vpack.c.bf16 %v1046, %v1046
        %1049 = vrot.lane.b32.xlu0 %v1047, 32
        %v1050 = vpop.permute.xlu0 %1049
        %v1052 = vsel %vm356, %v1050, 0
        %1054 = vmatpush.bf16.msra.mxu0 0
        %1055 = vmatpush.bf16.msra.mxu0 0
        %1056 = vmatpush.bf16.msra.mxu0 0
        %1057 = vmatpush.bf16.msra.mxu0 0
        %1058 = vmatpush.bf16.msra.mxu0 0
        %1059 = vmatpush.bf16.msra.mxu0 0
        %1060 = vmatpush.bf16.msra.mxu0 %v832
        %1061 = vmatpush.bf16.msra.mxu0 %v831
        %1062 = vmatmul.bf16.gmra.mxu0 %v1052
        %v1063 = vpop.f32.mrf.mxu0
        %v1064 = vadd.f32 0.0, %v1063
        %v1065 = vpop.f32.mrf.mxu0
        %1066 = vdwg.mxu0
        %v1067 = vld [vmem:[%s745] sm:$0xff]
        %1068 = vmatpush.bf16.msra.mxu0 0
        %1069 = vmatpush.bf16.msra.mxu0 0
        %1070 = vmatpush.bf16.msra.mxu0 0
        %1071 = vmatpush.bf16.msra.mxu0 0
        %1072 = vmatpush.bf16.msra.mxu0 0
        %1073 = vmatpush.bf16.msra.mxu0 0
        %1074 = vmatpush.bf16.msra.mxu0 %v765
        %1075 = vmatpush.bf16.msra.mxu0 %v764
        %1076 = vmatmul.bf16.gmra.mxu0 %v1052
        %v1077 = vpop.f32.mrf.mxu0
        %v1078 = vadd.f32 0.0, %v1077
        %v1079 = vpop.f32.mrf.mxu0
        %1080 = vdwg.mxu0
        %v1081 = vadd.f32 %v1067, %v1078
        %v1082 = vxor.u32 %v1081, 2147483648
        %v1083 = vmul.f32 %v1082, 1.442695
        %v1084 = vpow.pop %v1083
        %v1085 = vadd.f32 %v1084, 1.0
        %v1086 = vrcp.pop %v1085
        %v1087 = vmul.f32 %v1085, %v1086
        %v1088 = vsub.f32 1.0, %v1087
        %v1089 = vmul.f32 %v1086, %v1088
        %v1090 = vadd.f32 %v1086, %v1089
        %vm1091 = vweird.f32 %v1085
        %vm1092 = vweird.f32 %v1086
        %vm1093 = vmor %vm1091, %vm1092
        %v1094 = vsel %vm1093, %v1086, %v1090
        %v1095 = vand.u32 2147483647, %v1085
        %vm1096 = vcmp.eq.f32.partialorder %v1095, 8.507059e+37
        %v1097 = vand.u32 %v1085, 2147483648
        %v1098 = vor.u32 1.1754944e-38, %v1097
        %v1099 = vsel %vm1096, %v1098, %v1094
        %v1100 = vmul.f32 1.0, %v1099
        %v1101 = vtanh.pop %v1081
        %v1102 = vmul.f32 %v1100, %v1040
        %1104 = vrot.lane.b32.xlu0 %v1101, 64
        %v1105 = vpop.permute.xlu0 %1104
        %v1107 = vmul.f32 %v1100, %v1105
        %1109 = vrot.lane.b32.xlu0 %v1107, 32
        %v1110 = vpop.permute.xlu0 %1109
        %v1112 = vadd.f32 %v1102, %v1110
        %v1113 = vtanh.pop %v1112
        %1115 = vrot.lane.b32.xlu0 %v1113, 64
        %v1116 = vpop.permute.xlu0 %1115
        %v1118 = vmul.f32 %v1100, %v1116
        %v1119 = vpack.c.bf16 %v1118, %v1118
        %1121 = vrot.lane.b32.xlu0 %v1119, 32
        %v1122 = vpop.permute.xlu0 %1121
        %v1124 = vsel %vm356, %v1122, 0
        %1126 = vmatpush.bf16.msra.mxu0 0
        %1127 = vmatpush.bf16.msra.mxu0 0
        %1128 = vmatpush.bf16.msra.mxu0 0
        %1129 = vmatpush.bf16.msra.mxu0 0
        %1130 = vmatpush.bf16.msra.mxu0 0
        %1131 = vmatpush.bf16.msra.mxu0 0
        %1132 = vmatpush.bf16.msra.mxu0 %v832
        %1133 = vmatpush.bf16.msra.mxu0 %v831
        %1134 = vmatmul.bf16.gmra.mxu0 %v1124
        %v1135 = vpop.f32.mrf.mxu0
        %v1136 = vadd.f32 0.0, %v1135
        %v1137 = vpop.f32.mrf.mxu0
        %1138 = vdwg.mxu0
        %v1139 = vmax.f32 %v848, %v920
        %v1140 = vmax.f32 %v1139, %v992
        %v1141 = vmax.f32 %v1140, %v1064
        %v1142 = vmax.f32 %v1141, %v1136
        %v1143 = vsub.f32 %v848, %v1142
        %v1144 = vmul.f32 %v1143, 1.442695
        %v1145 = vpow.pop %v1144
        %v1146 = vadd.f32 %v1145, 0.0
        %1148 = vrot.lane.b32.xlu0 %v848, 127
        %v1149 = vpop.permute.xlu0 %1148
        %v1151 = vmul.f32 %v1145, %v1149
        %v1152 = vadd.f32 %v1151, 0.0
        %v1153 = vsub.f32 %v920, %v1142
        %v1154 = vmul.f32 %v1153, 1.442695
        %v1155 = vpow.pop %v1154
        %v1156 = vadd.f32 %v1146, %v1155
        %1158 = vrot.lane.b32.xlu0 %v920, 127
        %v1159 = vpop.permute.xlu0 %1158
        %v1161 = vmul.f32 %v1155, %v1159
        %v1162 = vadd.f32 %v1152, %v1161
        %v1163 = vsub.f32 %v992, %v1142
        %v1164 = vmul.f32 %v1163, 1.442695
        %v1165 = vpow.pop %v1164
        %v1166 = vadd.f32 %v1156, %v1165
        %1168 = vrot.lane.b32.xlu0 %v992, 127
        %v1169 = vpop.permute.xlu0 %1168
        %v1171 = vmul.f32 %v1165, %v1169
        %v1172 = vadd.f32 %v1162, %v1171
        %v1173 = vsub.f32 %v1064, %v1142
        %v1174 = vmul.f32 %v1173, 1.442695
        %v1175 = vpow.pop %v1174
        %v1176 = vadd.f32 %v1166, %v1175
        %1178 = vrot.lane.b32.xlu0 %v1064, 127
        %v1179 = vpop.permute.xlu0 %1178
        %v1181 = vmul.f32 %v1175, %v1179
        %v1182 = vadd.f32 %v1172, %v1181
        %v1183 = vsub.f32 %v1136, %v1142
        %v1184 = vmul.f32 %v1183, 1.442695
        %v1185 = vpow.pop %v1184
        %v1186 = vadd.f32 %v1176, %v1185
        %1188 = vrot.lane.b32.xlu0 %v1136, 127
        %v1189 = vpop.permute.xlu0 %1188
        %v1191 = vmul.f32 %v1185, %v1189
        %v1192 = vadd.f32 %v1182, %v1191
        %v1193 = vrcp.pop %v1186
        %v1194 = vmul.f32 %v1192, %v1193
        %v1195 = vld [vmem:[#allocation3] sm:$0x1]
        %v1197 = vperm.slane %v1195, 0
        %v1199 = vadd.f32 %v1194, %v1197
        %vm1200 = vcmask 7168
        %1201 = vst.msk [vmem:[%s332] sm:$0xff] %vm1200, %v1199
        %p1202 = scmp.lt.s32.totalorder %s24, 1
        %s1203 = scalar_select %p1202, %s24, 1
        %s1204 = smul.addr %s1203, 8
        %s1205 = scalar_lea.vmem %s7, %s1204
        // Predicated region
        $region61: #{tpu_custom_call.1} parent=47 // pred_check
          %p1206 = pneg %p194
        $region62: #{tpu_custom_call.1} parent=47 // pred_check_branch
          %1208 = sbr.rel (%p1206) target = $region64
        $region63: #{tpu_custom_call.1} parent=47 // pred_region
          _
        $region64: #{tpu_custom_call.1} parent=47 // pred_fallthru
          _
      $region48: #{tpu_custom_call.1} parent=5 // pred_fallthru
        _
      %p1209 = scmp.le.s32.totalorder 2, %s19
      // Predicated region
      $region65: #{tpu_custom_call.1} parent=5 // pred_check
        %p1210 = pneg %p1209
      $region66: #{tpu_custom_call.1} parent=5 // pred_check_branch
        %1212 = sbr.rel (%p1210) target = $region68
      $region67: #{tpu_custom_call.1} parent=5 // pred_region
        %s1213 = ssub.s32 %s19, 2
        // Predicated region
        $region69: #{tpu_custom_call.1} parent=67 // pred_check
          %p1214 = pneg %p200
        $region70: #{tpu_custom_call.1} parent=67 // pred_check_branch
          %1216 = sbr.rel (%p1214) target = $region72
        $region71: #{tpu_custom_call.1} parent=67 // pred_region
          %p1217 = scmp.lt.s32.totalorder %s25, 1
          %s1218 = scalar_select %p1217, %s25, 1
          %s1219 = smul.addr %s1218, 8
          %s1220 = scalar_lea.vmem %s7, %s1219
        $region72: #{tpu_custom_call.1} parent=67 // pred_fallthru
          _
      $region68: #{tpu_custom_call.1} parent=5 // pred_fallthru
        _
    $region6: #{tpu_custom_call.1} parent=1 // loop_footer
      %s23 = sadd.s32 1, %s19
    $region7: #{tpu_custom_call.1} parent=1 // loop_footer_branch
      %18 = sbr.rel target = $region3
    $region8: #{tpu_custom_call.1} parent=1 // loop_exit
      _
    %1221 = vsyncpa [#allocation5], 1
    %s1222 = scalar_lea.sflag [#allocation5], 1
    %1223 = vsyncpa %s1222, 1
    %1224 = vsyncpa [#allocation7], 1

</llo_original>
